<compile_context>
chip_gen: v5e
topology: v5e:2x2
jax: 0.10.0
libtpu: 0.0.40
codegen_flags: <defaults>
</compile_context>

<pallas_src>
import jax
import jax.numpy as jnp
from jax.experimental import pallas as pl
from jax.experimental.pallas import tpu as pltpu


def _make_lstm_kernel(num_layers, seq_len, batch, hidden):
    """Builds the fused multi-layer LSTM kernel for fixed (L, T, B, H)."""
    L, T, B, H = num_layers, seq_len, batch, hidden
    G = 4 * H

    def kernel(*refs):
        # ---- unpack refs: inputs, outputs, scratch ----
        proj0_ref = refs[0]                  # (T*B, 4H) f32  layer-0 proj + fused bias
        whh_ref = refs[1]                    # (L, H, 4H) bf16 fused recurrent weights
        if L > 1:
            wih_ref = refs[2]                # (L-1, H, 4H) bf16 fused input weights
            b_ref = refs[3]                  # (L-1, 1, 4H) f32 fused biases
            rest = refs[4:]
        else:
            wih_ref = b_ref = None
            rest = refs[2:]
        y_ref, h_out_ref, c_out_ref, hseq_scr, projl_scr = rest

        zero = jnp.zeros((B, H), jnp.float32)

        def run_layer(layer, proj_ref):
            last = layer == L - 1  # static Python bool

            def step(t, carry):
                h, c = carry
                row = pl.multiple_of(t * B, B)
                # One fused (B,H)x(H,4H) bf16 MXU push on the serial critical
                # path; gates come out as a single lane-dense (B, 4H) tile.
                gates = proj_ref[pl.ds(row, B), :] + jnp.dot(
                    h.astype(jnp.bfloat16), whh_ref[layer],
                    preferred_element_type=jnp.float32)
                i_g = jax.nn.sigmoid(gates[:, 0 * H:1 * H])
                f_g = jax.nn.sigmoid(gates[:, 1 * H:2 * H])
                g_g = jnp.tanh(gates[:, 2 * H:3 * H])
                o_g = jax.nn.sigmoid(gates[:, 3 * H:4 * H])
                c_new = f_g * c + i_g * g_g
                h_new = o_g * jnp.tanh(c_new)
                if last:
                    y_ref[t] = h_new
                else:
                    hseq_scr[pl.ds(row, B), :] = h_new
                return h_new, c_new

            h_fin, c_fin = jax.lax.fori_loop(
                0, T, step, (zero, zero), unroll=min(T, 8))
            h_out_ref[layer] = h_fin
            c_out_ref[layer] = c_fin

        # ---- layer 0: input projection precomputed in the wrapper ----
        run_layer(0, proj0_ref)

        # ---- layers 1..L-1: one batched projection matmul, then recurrence ----
        for layer in range(1, L):
            # Hoisted input projection: a single large-M (T*B,H)x(H,4H) matmul
            # over the previous layer's full hidden sequence (reads hseq before
            # run_layer overwrites it for this layer).
            x_all = hseq_scr[...].astype(jnp.bfloat16)          # (T*B, H)
            projl_scr[...] = jnp.dot(
                x_all, wih_ref[layer - 1],
                preferred_element_type=jnp.float32) + b_ref[layer - 1]
            run_layer(layer, projl_scr)

    return kernel


def lstm_unit_forward(x, params):
    """Equivalent of LstmUnit.forward (eval mode, dropout disabled).

    x      : (seq_len, batch, input_size)  -- time-major, like the PyTorch module
    params : list (length num_layers) of dicts {w_ih, w_hh, b_ih, b_hh}
             in the PyTorch nn.LSTM layout (gate order i, f, g, o).
    returns: (y, (h, c)) with y (T, B, H), h/c (num_layers, B, H)
    """
    T, B, D = x.shape
    L = len(params)
    H = params[0]["w_hh"].shape[1]
    G = 4 * H

    # ---- layer-0 input projection (+ fused bias), hoisted to XLA; kept f32
    # (it is not an MXU operand inside the kernel, only an f32 addend). ----
    b0 = params[0]["b_ih"] + params[0]["b_hh"]                  # (4H,)
    proj0 = (x.reshape(T * B, D).astype(jnp.float32)
             @ params[0]["w_ih"].T.astype(jnp.float32) + b0)    # (T*B, 4H)
    proj0 = proj0.astype(jnp.float32)

    # ---- fused gate-major weights (H, 4H), bf16 for the MXU ----
    whh = jnp.stack([p["w_hh"].T for p in params]).astype(jnp.bfloat16)  # (L,H,4H)

    inputs = [proj0, whh]
    in_specs = [
        pl.BlockSpec((T * B, G), lambda i: (0, 0)),
        pl.BlockSpec((L, H, G), lambda i: (0, 0, 0)),
    ]
    if L > 1:
        wih = jnp.stack([p["w_ih"].T for p in params[1:]]).astype(jnp.bfloat16)
        bias = jnp.stack([(p["b_ih"] + p["b_hh"]).reshape(1, G)
                          for p in params[1:]]).astype(jnp.float32)
        inputs += [wih, bias]
        in_specs += [
            pl.BlockSpec((L - 1, H, G), lambda i: (0, 0, 0)),
            pl.BlockSpec((L - 1, 1, G), lambda i: (0, 0, 0)),
        ]

    out_shape = (
        jax.ShapeDtypeStruct((T, B, H), jnp.float32),   # y
        jax.ShapeDtypeStruct((L, B, H), jnp.float32),   # h
        jax.ShapeDtypeStruct((L, B, H), jnp.float32),   # c
    )
    out_specs = (
        pl.BlockSpec((T, B, H), lambda i: (0, 0, 0)),
        pl.BlockSpec((L, B, H), lambda i: (0, 0, 0)),
        pl.BlockSpec((L, B, H), lambda i: (0, 0, 0)),
    )
    scratch_shapes = [
        pltpu.VMEM((T * B, H), jnp.float32),   # inter-layer hidden sequence
        pltpu.VMEM((T * B, G), jnp.float32),   # hoisted projection, layers >= 1
    ]

    # ---- scoped-VMEM budget sized to the actual residents (+ margin) ----
    def _nbytes(shape, dtype):
        n = 1
        for s in shape:
            n *= s
        return n * jnp.dtype(dtype).itemsize

    vmem_limit = (
        2 * sum(int(a.size) * a.dtype.itemsize for a in inputs)      # double-buffered
        + 2 * sum(_nbytes(o.shape, o.dtype) for o in out_shape)
        + _nbytes((T * B, H), jnp.float32)
        + _nbytes((T * B, G), jnp.float32)
        + (4 << 20))
    vmem_limit = int(max(vmem_limit, 8 << 20))

    grid_spec = pltpu.PrefetchScalarGridSpec(
        num_scalar_prefetch=0,
        grid=(1,),   # single grid step: whole multi-layer LSTM in one invocation
        in_specs=in_specs,
        out_specs=out_specs,
        scratch_shapes=scratch_shapes,
    )

    y, h, c = pl.pallas_call(
        _make_lstm_kernel(L, T, B, H),
        out_shape=out_shape,
        grid_spec=grid_spec,
        compiler_params=pltpu.CompilerParams(
            dimension_semantics=("arbitrary",),
            vmem_limit_bytes=vmem_limit),
    )(*inputs)
    return y, (h, c)


def init_lstm_params(key, input_size, hidden_num, num_layers):
    """Deterministic init mimicking PyTorch's uniform(-1/sqrt(H), 1/sqrt(H))."""
    params = []
    bound = 1.0 / jnp.sqrt(jnp.float32(hidden_num))
    for layer in range(num_layers):
        d_in = input_size if layer == 0 else hidden_num
        key, k1, k2, k3, k4 = jax.random.split(key, 5)
        params.append(dict(
            w_ih=jax.random.uniform(k1, (4 * hidden_num, d_in),
                                    jnp.float32, -bound, bound),
            w_hh=jax.random.uniform(k2, (4 * hidden_num, hidden_num),
                                    jnp.float32, -bound, bound),
            b_ih=jax.random.uniform(k3, (4 * hidden_num,),
                                    jnp.float32, -bound, bound),
            b_hh=jax.random.uniform(k4, (4 * hidden_num,),
                                    jnp.float32, -bound, bound),
        ))
    return params


def _reference_forward(x, params):
    """Pure-JAX f32 reference (lax.scan LSTM) for a sanity check."""
    T, B, _ = x.shape
    y = x
    h_fin, c_fin = [], []
    for p in params:
        H = p["w_hh"].shape[1]
        wih_t, whh_t = p["w_ih"].T, p["w_hh"].T
        bias = p["b_ih"] + p["b_hh"]

        def step(carry, x_t):
            h, c = carry
            gates = x_t @ wih_t + h @ whh_t + bias
            i = jax.nn.sigmoid(gates[:, 0 * H:1 * H])
            f = jax.nn.sigmoid(gates[:, 1 * H:2 * H])
            g = jnp.tanh(gates[:, 2 * H:3 * H])
            o = jax.nn.sigmoid(gates[:, 3 * H:4 * H])
            c = f * c + i * g
            h = o * jnp.tanh(c)
            return (h, c), h

        init = (jnp.zeros((B, H), jnp.float32), jnp.zeros((B, H), jnp.float32))
        (h_l, c_l), y = jax.lax.scan(step, init, y)
        h_fin.append(h_l)
        c_fin.append(c_l)
    return y, (jnp.stack(h_fin), jnp.stack(c_fin))


if __name__ == "__main__":
    # Small shapes consistent with the module: LSTM(input_size=4, hidden=32,
    # layers=2); x is time-major (seq_len=8, batch=2, input_size=4).
    seq_len, batch, input_size = 8, 2, 4
    hidden_num, num_layers = 32, 2

    key = jax.random.PRNGKey(0)
    key, kx = jax.random.split(key)
    x = jax.random.normal(kx, (seq_len, batch, input_size), jnp.float32)
    params = init_lstm_params(key, input_size, hidden_num, num_layers)

    fwd = jax.jit(lstm_unit_forward)
    y, (h, c) = fwd(x, params)
    y, h, c = jax.block_until_ready((y, h, c))

    assert y.shape == (seq_len, batch, hidden_num), y.shape
    assert h.shape == (num_layers, batch, hidden_num), h.shape
    assert c.shape == (num_layers, batch, hidden_num), c.shape

    # bf16 matmul operands with f32 accumulation => slightly looser tolerance
    # vs the all-f32 reference.
    y_ref, (h_ref, c_ref) = _reference_forward(x, params)
    assert jnp.allclose(y, y_ref, rtol=2e-2, atol=2e-2), "y mismatch vs reference"
    assert jnp.allclose(h, h_ref, rtol=2e-2, atol=2e-2), "h mismatch vs reference"
    assert jnp.allclose(c, c_ref, rtol=2e-2, atol=2e-2), "c mismatch vs reference"

    print("KERNEL_OK")
</pallas_src>

<mosaic_0001>
module attributes {stable_mosaic.version = 11 : i64} {
  func.func @kernel(%arg0: i32, %arg1: memref<16x128xf32, #tpu.memory_space<vmem>>, %arg2: memref<2x32x128xbf16, #tpu.memory_space<vmem>>, %arg3: memref<1x32x128xbf16, #tpu.memory_space<vmem>>, %arg4: memref<1x1x128xf32, #tpu.memory_space<vmem>>, %arg5: memref<8x2x32xf32, #tpu.memory_space<vmem>>, %arg6: memref<2x2x32xf32, #tpu.memory_space<vmem>>, %arg7: memref<2x2x32xf32, #tpu.memory_space<vmem>>, %arg8: memref<16x32xf32, #tpu.memory_space<vmem>>, %arg9: memref<16x128xf32, #tpu.memory_space<vmem>>) attributes {dimension_semantics = [#tpu.dimension_semantics<arbitrary>], iteration_bounds = array<i64: 1>, scalar_prefetch = 0 : i64, scratch_operands = 2 : i64, tpu.core_type = #tpu.core_type<tc>, window_params = [{pipeline_mode = #tpu.pipeline_mode<synchronous>, transform_indices = @transform_0, window_bounds = array<i64: 16, 128>}, {pipeline_mode = #tpu.pipeline_mode<synchronous>, transform_indices = @transform_1, window_bounds = array<i64: 2, 32, 128>}, {pipeline_mode = #tpu.pipeline_mode<synchronous>, transform_indices = @transform_2, window_bounds = array<i64: 1, 32, 128>}, {pipeline_mode = #tpu.pipeline_mode<synchronous>, transform_indices = @transform_3, window_bounds = array<i64: 1, 1, 128>}, {pipeline_mode = #tpu.pipeline_mode<synchronous>, transform_indices = @transform_4, window_bounds = array<i64: 8, 2, 32>}, {pipeline_mode = #tpu.pipeline_mode<synchronous>, transform_indices = @transform_5, window_bounds = array<i64: 2, 2, 32>}, {pipeline_mode = #tpu.pipeline_mode<synchronous>, transform_indices = @transform_6, window_bounds = array<i64: 2, 2, 32>}]} {
    %cst = arith.constant 0.000000e+00 : f32
    %0 = vector.broadcast %cst : f32 to vector<2x32xf32>
    %c0_i32 = arith.constant 0 : i32
    %c2_i32 = arith.constant 2 : i32
    %1 = arith.muli %c0_i32, %c2_i32 : i32
    %2 = tpu.assume_multiple %1, 2 : i32
    %3 = arith.index_cast %2 : i32 to index
    %c0 = arith.constant 0 : index
    %4 = vector.load %arg1[%3, %c0] : memref<16x128xf32, #tpu.memory_space<vmem>>, vector<2x128xf32>
    %5 = arith.truncf %0 : vector<2x32xf32> to vector<2x32xbf16>
    %c0_0 = arith.constant 0 : index
    %c0_1 = arith.constant 0 : index
    %c0_2 = arith.constant 0 : index
    %6 = vector.load %arg2[%c0_0, %c0_1, %c0_2] : memref<2x32x128xbf16, #tpu.memory_space<vmem>>, vector<1x32x128xbf16>
    %7 = vector.shape_cast %6 : vector<1x32x128xbf16> to vector<32x128xbf16>
    %cst_3 = arith.constant dense<0.000000e+00> : vector<2x128xf32>
    %8 = tpu.matmul %5, %7, %cst_3 {dimension_numbers = #tpu.dot_dimension_numbers<[1], [0], [0], [1], [0, 0, 1, 1], [], []>} : vector<2x32xbf16>, vector<32x128xbf16>, vector<2x128xf32> -> vector<2x128xf32>
    %9 = arith.addf %4, %8 : vector<2x128xf32>
    %10 = vector.extract_strided_slice %9 {offsets = [0, 0], sizes = [2, 32], strides = [1, 1]} : vector<2x128xf32> to vector<2x32xf32>
    %11 = arith.negf %10 : vector<2x32xf32>
    %12 = math.exp %11 : vector<2x32xf32>
    %cst_4 = arith.constant 1.000000e+00 : f32
    %13 = vector.broadcast %cst_4 : f32 to vector<2x32xf32>
    %14 = arith.addf %13, %12 : vector<2x32xf32>
    %15 = arith.divf %13, %14 : vector<2x32xf32>
    %16 = vector.extract_strided_slice %9 {offsets = [0, 32], sizes = [2, 32], strides = [1, 1]} : vector<2x128xf32> to vector<2x32xf32>
    %17 = arith.negf %16 : vector<2x32xf32>
    %18 = math.exp %17 : vector<2x32xf32>
    %cst_5 = arith.constant 1.000000e+00 : f32
    %19 = vector.broadcast %cst_5 : f32 to vector<2x32xf32>
    %20 = arith.addf %19, %18 : vector<2x32xf32>
    %21 = arith.divf %19, %20 : vector<2x32xf32>
    %22 = vector.extract_strided_slice %9 {offsets = [0, 64], sizes = [2, 32], strides = [1, 1]} : vector<2x128xf32> to vector<2x32xf32>
    %23 = math.tanh %22 : vector<2x32xf32>
    %24 = vector.extract_strided_slice %9 {offsets = [0, 96], sizes = [2, 32], strides = [1, 1]} : vector<2x128xf32> to vector<2x32xf32>
    %25 = arith.negf %24 : vector<2x32xf32>
    %26 = math.exp %25 : vector<2x32xf32>
    %cst_6 = arith.constant 1.000000e+00 : f32
    %27 = vector.broadcast %cst_6 : f32 to vector<2x32xf32>
    %28 = arith.addf %27, %26 : vector<2x32xf32>
    %29 = arith.divf %27, %28 : vector<2x32xf32>
    %30 = arith.mulf %21, %0 : vector<2x32xf32>
    %31 = arith.mulf %15, %23 : vector<2x32xf32>
    %32 = arith.addf %30, %31 : vector<2x32xf32>
    %33 = math.tanh %32 : vector<2x32xf32>
    %34 = arith.mulf %29, %33 : vector<2x32xf32>
    %35 = arith.index_cast %2 : i32 to index
    %c0_7 = arith.constant 0 : index
    %36 = vector.load %arg8[%35, %c0_7] : memref<16x32xf32, #tpu.memory_space<vmem>>, vector<2x32xf32>
    tpu.vector_store %arg8[%35, %c0_7], %34 {strides = array<i32>} : memref<16x32xf32, #tpu.memory_space<vmem>>, vector<2x32xf32>,
    %c1_i32 = arith.constant 1 : i32
    %c2_i32_8 = arith.constant 2 : i32
    %37 = arith.muli %c1_i32, %c2_i32_8 : i32
    %38 = tpu.assume_multiple %37, 2 : i32
    %39 = arith.index_cast %38 : i32 to index
    %c0_9 = arith.constant 0 : index
    %40 = vector.load %arg1[%39, %c0_9] : memref<16x128xf32, #tpu.memory_space<vmem>>, vector<2x128xf32>
    %41 = arith.truncf %34 : vector<2x32xf32> to vector<2x32xbf16>
    %c0_10 = arith.constant 0 : index
    %c0_11 = arith.constant 0 : index
    %c0_12 = arith.constant 0 : index
    %42 = vector.load %arg2[%c0_10, %c0_11, %c0_12] : memref<2x32x128xbf16, #tpu.memory_space<vmem>>, vector<1x32x128xbf16>
    %43 = vector.shape_cast %42 : vector<1x32x128xbf16> to vector<32x128xbf16>
    %cst_13 = arith.constant dense<0.000000e+00> : vector<2x128xf32>
    %44 = tpu.matmul %41, %43, %cst_13 {dimension_numbers = #tpu.dot_dimension_numbers<[1], [0], [0], [1], [0, 0, 1, 1], [], []>} : vector<2x32xbf16>, vector<32x128xbf16>, vector<2x128xf32> -> vector<2x128xf32>
    %45 = arith.addf %40, %44 : vector<2x128xf32>
    %46 = vector.extract_strided_slice %45 {offsets = [0, 0], sizes = [2, 32], strides = [1, 1]} : vector<2x128xf32> to vector<2x32xf32>
    %47 = arith.negf %46 : vector<2x32xf32>
    %48 = math.exp %47 : vector<2x32xf32>
    %cst_14 = arith.constant 1.000000e+00 : f32
    %49 = vector.broadcast %cst_14 : f32 to vector<2x32xf32>
    %50 = arith.addf %49, %48 : vector<2x32xf32>
    %51 = arith.divf %49, %50 : vector<2x32xf32>
    %52 = vector.extract_strided_slice %45 {offsets = [0, 32], sizes = [2, 32], strides = [1, 1]} : vector<2x128xf32> to vector<2x32xf32>
    %53 = arith.negf %52 : vector<2x32xf32>
    %54 = math.exp %53 : vector<2x32xf32>
    %cst_15 = arith.constant 1.000000e+00 : f32
    %55 = vector.broadcast %cst_15 : f32 to vector<2x32xf32>
    %56 = arith.addf %55, %54 : vector<2x32xf32>
    %57 = arith.divf %55, %56 : vector<2x32xf32>
    %58 = vector.extract_strided_slice %45 {offsets = [0, 64], sizes = [2, 32], strides = [1, 1]} : vector<2x128xf32> to vector<2x32xf32>
    %59 = math.tanh %58 : vector<2x32xf32>
    %60 = vector.extract_strided_slice %45 {offsets = [0, 96], sizes = [2, 32], strides = [1, 1]} : vector<2x128xf32> to vector<2x32xf32>
    %61 = arith.negf %60 : vector<2x32xf32>
    %62 = math.exp %61 : vector<2x32xf32>
    %cst_16 = arith.constant 1.000000e+00 : f32
    %63 = vector.broadcast %cst_16 : f32 to vector<2x32xf32>
    %64 = arith.addf %63, %62 : vector<2x32xf32>
    %65 = arith.divf %63, %64 : vector<2x32xf32>
    %66 = arith.mulf %57, %32 : vector<2x32xf32>
    %67 = arith.mulf %51, %59 : vector<2x32xf32>
    %68 = arith.addf %66, %67 : vector<2x32xf32>
    %69 = math.tanh %68 : vector<2x32xf32>
    %70 = arith.mulf %65, %69 : vector<2x32xf32>
    %71 = arith.index_cast %38 : i32 to index
    %c0_17 = arith.constant 0 : index
    %72 = vector.load %arg8[%71, %c0_17] : memref<16x32xf32, #tpu.memory_space<vmem>>, vector<2x32xf32>
    tpu.vector_store %arg8[%71, %c0_17], %70 {strides = array<i32>} : memref<16x32xf32, #tpu.memory_space<vmem>>, vector<2x32xf32>,
    %c2_i32_18 = arith.constant 2 : i32
    %c2_i32_19 = arith.constant 2 : i32
    %73 = arith.muli %c2_i32_18, %c2_i32_19 : i32
    %74 = tpu.assume_multiple %73, 2 : i32
    %75 = arith.index_cast %74 : i32 to index
    %c0_20 = arith.constant 0 : index
    %76 = vector.load %arg1[%75, %c0_20] : memref<16x128xf32, #tpu.memory_space<vmem>>, vector<2x128xf32>
    %77 = arith.truncf %70 : vector<2x32xf32> to vector<2x32xbf16>
    %c0_21 = arith.constant 0 : index
    %c0_22 = arith.constant 0 : index
    %c0_23 = arith.constant 0 : index
    %78 = vector.load %arg2[%c0_21, %c0_22, %c0_23] : memref<2x32x128xbf16, #tpu.memory_space<vmem>>, vector<1x32x128xbf16>
    %79 = vector.shape_cast %78 : vector<1x32x128xbf16> to vector<32x128xbf16>
    %cst_24 = arith.constant dense<0.000000e+00> : vector<2x128xf32>
    %80 = tpu.matmul %77, %79, %cst_24 {dimension_numbers = #tpu.dot_dimension_numbers<[1], [0], [0], [1], [0, 0, 1, 1], [], []>} : vector<2x32xbf16>, vector<32x128xbf16>, vector<2x128xf32> -> vector<2x128xf32>
    %81 = arith.addf %76, %80 : vector<2x128xf32>
    %82 = vector.extract_strided_slice %81 {offsets = [0, 0], sizes = [2, 32], strides = [1, 1]} : vector<2x128xf32> to vector<2x32xf32>
    %83 = arith.negf %82 : vector<2x32xf32>
    %84 = math.exp %83 : vector<2x32xf32>
    %cst_25 = arith.constant 1.000000e+00 : f32
    %85 = vector.broadcast %cst_25 : f32 to vector<2x32xf32>
    %86 = arith.addf %85, %84 : vector<2x32xf32>
    %87 = arith.divf %85, %86 : vector<2x32xf32>
    %88 = vector.extract_strided_slice %81 {offsets = [0, 32], sizes = [2, 32], strides = [1, 1]} : vector<2x128xf32> to vector<2x32xf32>
    %89 = arith.negf %88 : vector<2x32xf32>
    %90 = math.exp %89 : vector<2x32xf32>
    %cst_26 = arith.constant 1.000000e+00 : f32
    %91 = vector.broadcast %cst_26 : f32 to vector<2x32xf32>
    %92 = arith.addf %91, %90 : vector<2x32xf32>
    %93 = arith.divf %91, %92 : vector<2x32xf32>
    %94 = vector.extract_strided_slice %81 {offsets = [0, 64], sizes = [2, 32], strides = [1, 1]} : vector<2x128xf32> to vector<2x32xf32>
    %95 = math.tanh %94 : vector<2x32xf32>
    %96 = vector.extract_strided_slice %81 {offsets = [0, 96], sizes = [2, 32], strides = [1, 1]} : vector<2x128xf32> to vector<2x32xf32>
    %97 = arith.negf %96 : vector<2x32xf32>
    %98 = math.exp %97 : vector<2x32xf32>
    %cst_27 = arith.constant 1.000000e+00 : f32
    %99 = vector.broadcast %cst_27 : f32 to vector<2x32xf32>
    %100 = arith.addf %99, %98 : vector<2x32xf32>
    %101 = arith.divf %99, %100 : vector<2x32xf32>
    %102 = arith.mulf %93, %68 : vector<2x32xf32>
    %103 = arith.mulf %87, %95 : vector<2x32xf32>
    %104 = arith.addf %102, %103 : vector<2x32xf32>
    %105 = math.tanh %104 : vector<2x32xf32>
    %106 = arith.mulf %101, %105 : vector<2x32xf32>
    %107 = arith.index_cast %74 : i32 to index
    %c0_28 = arith.constant 0 : index
    %108 = vector.load %arg8[%107, %c0_28] : memref<16x32xf32, #tpu.memory_space<vmem>>, vector<2x32xf32>
    tpu.vector_store %arg8[%107, %c0_28], %106 {strides = array<i32>} : memref<16x32xf32, #tpu.memory_space<vmem>>, vector<2x32xf32>,
    %c3_i32 = arith.constant 3 : i32
    %c2_i32_29 = arith.constant 2 : i32
    %109 = arith.muli %c3_i32, %c2_i32_29 : i32
    %110 = tpu.assume_multiple %109, 2 : i32
    %111 = arith.index_cast %110 : i32 to index
    %c0_30 = arith.constant 0 : index
    %112 = vector.load %arg1[%111, %c0_30] : memref<16x128xf32, #tpu.memory_space<vmem>>, vector<2x128xf32>
    %113 = arith.truncf %106 : vector<2x32xf32> to vector<2x32xbf16>
    %c0_31 = arith.constant 0 : index
    %c0_32 = arith.constant 0 : index
    %c0_33 = arith.constant 0 : index
    %114 = vector.load %arg2[%c0_31, %c0_32, %c0_33] : memref<2x32x128xbf16, #tpu.memory_space<vmem>>, vector<1x32x128xbf16>
    %115 = vector.shape_cast %114 : vector<1x32x128xbf16> to vector<32x128xbf16>
    %cst_34 = arith.constant dense<0.000000e+00> : vector<2x128xf32>
    %116 = tpu.matmul %113, %115, %cst_34 {dimension_numbers = #tpu.dot_dimension_numbers<[1], [0], [0], [1], [0, 0, 1, 1], [], []>} : vector<2x32xbf16>, vector<32x128xbf16>, vector<2x128xf32> -> vector<2x128xf32>
    %117 = arith.addf %112, %116 : vector<2x128xf32>
    %118 = vector.extract_strided_slice %117 {offsets = [0, 0], sizes = [2, 32], strides = [1, 1]} : vector<2x128xf32> to vector<2x32xf32>
    %119 = arith.negf %118 : vector<2x32xf32>
    %120 = math.exp %119 : vector<2x32xf32>
    %cst_35 = arith.constant 1.000000e+00 : f32
    %121 = vector.broadcast %cst_35 : f32 to vector<2x32xf32>
    %122 = arith.addf %121, %120 : vector<2x32xf32>
    %123 = arith.divf %121, %122 : vector<2x32xf32>
    %124 = vector.extract_strided_slice %117 {offsets = [0, 32], sizes = [2, 32], strides = [1, 1]} : vector<2x128xf32> to vector<2x32xf32>
    %125 = arith.negf %124 : vector<2x32xf32>
    %126 = math.exp %125 : vector<2x32xf32>
    %cst_36 = arith.constant 1.000000e+00 : f32
    %127 = vector.broadcast %cst_36 : f32 to vector<2x32xf32>
    %128 = arith.addf %127, %126 : vector<2x32xf32>
    %129 = arith.divf %127, %128 : vector<2x32xf32>
    %130 = vector.extract_strided_slice %117 {offsets = [0, 64], sizes = [2, 32], strides = [1, 1]} : vector<2x128xf32> to vector<2x32xf32>
    %131 = math.tanh %130 : vector<2x32xf32>
    %132 = vector.extract_strided_slice %117 {offsets = [0, 96], sizes = [2, 32], strides = [1, 1]} : vector<2x128xf32> to vector<2x32xf32>
    %133 = arith.negf %132 : vector<2x32xf32>
    %134 = math.exp %133 : vector<2x32xf32>
    %cst_37 = arith.constant 1.000000e+00 : f32
    %135 = vector.broadcast %cst_37 : f32 to vector<2x32xf32>
    %136 = arith.addf %135, %134 : vector<2x32xf32>
    %137 = arith.divf %135, %136 : vector<2x32xf32>
    %138 = arith.mulf %129, %104 : vector<2x32xf32>
    %139 = arith.mulf %123, %131 : vector<2x32xf32>
    %140 = arith.addf %138, %139 : vector<2x32xf32>
    %141 = math.tanh %140 : vector<2x32xf32>
    %142 = arith.mulf %137, %141 : vector<2x32xf32>
    %143 = arith.index_cast %110 : i32 to index
    %c0_38 = arith.constant 0 : index
    %144 = vector.load %arg8[%143, %c0_38] : memref<16x32xf32, #tpu.memory_space<vmem>>, vector<2x32xf32>
    tpu.vector_store %arg8[%143, %c0_38], %142 {strides = array<i32>} : memref<16x32xf32, #tpu.memory_space<vmem>>, vector<2x32xf32>,
    %c4_i32 = arith.constant 4 : i32
    %c2_i32_39 = arith.constant 2 : i32
    %145 = arith.muli %c4_i32, %c2_i32_39 : i32
    %146 = tpu.assume_multiple %145, 2 : i32
    %147 = arith.index_cast %146 : i32 to index
    %c0_40 = arith.constant 0 : index
    %148 = vector.load %arg1[%147, %c0_40] : memref<16x128xf32, #tpu.memory_space<vmem>>, vector<2x128xf32>
    %149 = arith.truncf %142 : vector<2x32xf32> to vector<2x32xbf16>
    %c0_41 = arith.constant 0 : index
    %c0_42 = arith.constant 0 : index
    %c0_43 = arith.constant 0 : index
    %150 = vector.load %arg2[%c0_41, %c0_42, %c0_43] : memref<2x32x128xbf16, #tpu.memory_space<vmem>>, vector<1x32x128xbf16>
    %151 = vector.shape_cast %150 : vector<1x32x128xbf16> to vector<32x128xbf16>
    %cst_44 = arith.constant dense<0.000000e+00> : vector<2x128xf32>
    %152 = tpu.matmul %149, %151, %cst_44 {dimension_numbers = #tpu.dot_dimension_numbers<[1], [0], [0], [1], [0, 0, 1, 1], [], []>} : vector<2x32xbf16>, vector<32x128xbf16>, vector<2x128xf32> -> vector<2x128xf32>
    %153 = arith.addf %148, %152 : vector<2x128xf32>
    %154 = vector.extract_strided_slice %153 {offsets = [0, 0], sizes = [2, 32], strides = [1, 1]} : vector<2x128xf32> to vector<2x32xf32>
    %155 = arith.negf %154 : vector<2x32xf32>
    %156 = math.exp %155 : vector<2x32xf32>
    %cst_45 = arith.constant 1.000000e+00 : f32
    %157 = vector.broadcast %cst_45 : f32 to vector<2x32xf32>
    %158 = arith.addf %157, %156 : vector<2x32xf32>
    %159 = arith.divf %157, %158 : vector<2x32xf32>
    %160 = vector.extract_strided_slice %153 {offsets = [0, 32], sizes = [2, 32], strides = [1, 1]} : vector<2x128xf32> to vector<2x32xf32>
    %161 = arith.negf %160 : vector<2x32xf32>
    %162 = math.exp %161 : vector<2x32xf32>
    %cst_46 = arith.constant 1.000000e+00 : f32
    %163 = vector.broadcast %cst_46 : f32 to vector<2x32xf32>
    %164 = arith.addf %163, %162 : vector<2x32xf32>
    %165 = arith.divf %163, %164 : vector<2x32xf32>
    %166 = vector.extract_strided_slice %153 {offsets = [0, 64], sizes = [2, 32], strides = [1, 1]} : vector<2x128xf32> to vector<2x32xf32>
    %167 = math.tanh %166 : vector<2x32xf32>
    %168 = vector.extract_strided_slice %153 {offsets = [0, 96], sizes = [2, 32], strides = [1, 1]} : vector<2x128xf32> to vector<2x32xf32>
    %169 = arith.negf %168 : vector<2x32xf32>
    %170 = math.exp %169 : vector<2x32xf32>
    %cst_47 = arith.constant 1.000000e+00 : f32
    %171 = vector.broadcast %cst_47 : f32 to vector<2x32xf32>
    %172 = arith.addf %171, %170 : vector<2x32xf32>
    %173 = arith.divf %171, %172 : vector<2x32xf32>
    %174 = arith.mulf %165, %140 : vector<2x32xf32>
    %175 = arith.mulf %159, %167 : vector<2x32xf32>
    %176 = arith.addf %174, %175 : vector<2x32xf32>
    %177 = math.tanh %176 : vector<2x32xf32>
    %178 = arith.mulf %173, %177 : vector<2x32xf32>
    %179 = arith.index_cast %146 : i32 to index
    %c0_48 = arith.constant 0 : index
    %180 = vector.load %arg8[%179, %c0_48] : memref<16x32xf32, #tpu.memory_space<vmem>>, vector<2x32xf32>
    tpu.vector_store %arg8[%179, %c0_48], %178 {strides = array<i32>} : memref<16x32xf32, #tpu.memory_space<vmem>>, vector<2x32xf32>,
    %c5_i32 = arith.constant 5 : i32
    %c2_i32_49 = arith.constant 2 : i32
    %181 = arith.muli %c5_i32, %c2_i32_49 : i32
    %182 = tpu.assume_multiple %181, 2 : i32
    %183 = arith.index_cast %182 : i32 to index
    %c0_50 = arith.constant 0 : index
    %184 = vector.load %arg1[%183, %c0_50] : memref<16x128xf32, #tpu.memory_space<vmem>>, vector<2x128xf32>
    %185 = arith.truncf %178 : vector<2x32xf32> to vector<2x32xbf16>
    %c0_51 = arith.constant 0 : index
    %c0_52 = arith.constant 0 : index
    %c0_53 = arith.constant 0 : index
    %186 = vector.load %arg2[%c0_51, %c0_52, %c0_53] : memref<2x32x128xbf16, #tpu.memory_space<vmem>>, vector<1x32x128xbf16>
    %187 = vector.shape_cast %186 : vector<1x32x128xbf16> to vector<32x128xbf16>
    %cst_54 = arith.constant dense<0.000000e+00> : vector<2x128xf32>
    %188 = tpu.matmul %185, %187, %cst_54 {dimension_numbers = #tpu.dot_dimension_numbers<[1], [0], [0], [1], [0, 0, 1, 1], [], []>} : vector<2x32xbf16>, vector<32x128xbf16>, vector<2x128xf32> -> vector<2x128xf32>
    %189 = arith.addf %184, %188 : vector<2x128xf32>
    %190 = vector.extract_strided_slice %189 {offsets = [0, 0], sizes = [2, 32], strides = [1, 1]} : vector<2x128xf32> to vector<2x32xf32>
    %191 = arith.negf %190 : vector<2x32xf32>
    %192 = math.exp %191 : vector<2x32xf32>
    %cst_55 = arith.constant 1.000000e+00 : f32
    %193 = vector.broadcast %cst_55 : f32 to vector<2x32xf32>
    %194 = arith.addf %193, %192 : vector<2x32xf32>
    %195 = arith.divf %193, %194 : vector<2x32xf32>
    %196 = vector.extract_strided_slice %189 {offsets = [0, 32], sizes = [2, 32], strides = [1, 1]} : vector<2x128xf32> to vector<2x32xf32>
    %197 = arith.negf %196 : vector<2x32xf32>
    %198 = math.exp %197 : vector<2x32xf32>
    %cst_56 = arith.constant 1.000000e+00 : f32
    %199 = vector.broadcast %cst_56 : f32 to vector<2x32xf32>
    %200 = arith.addf %199, %198 : vector<2x32xf32>
    %201 = arith.divf %199, %200 : vector<2x32xf32>
    %202 = vector.extract_strided_slice %189 {offsets = [0, 64], sizes = [2, 32], strides = [1, 1]} : vector<2x128xf32> to vector<2x32xf32>
    %203 = math.tanh %202 : vector<2x32xf32>
    %204 = vector.extract_strided_slice %189 {offsets = [0, 96], sizes = [2, 32], strides = [1, 1]} : vector<2x128xf32> to vector<2x32xf32>
    %205 = arith.negf %204 : vector<2x32xf32>
    %206 = math.exp %205 : vector<2x32xf32>
    %cst_57 = arith.constant 1.000000e+00 : f32
    %207 = vector.broadcast %cst_57 : f32 to vector<2x32xf32>
    %208 = arith.addf %207, %206 : vector<2x32xf32>
    %209 = arith.divf %207, %208 : vector<2x32xf32>
    %210 = arith.mulf %201, %176 : vector<2x32xf32>
    %211 = arith.mulf %195, %203 : vector<2x32xf32>
    %212 = arith.addf %210, %211 : vector<2x32xf32>
    %213 = math.tanh %212 : vector<2x32xf32>
    %214 = arith.mulf %209, %213 : vector<2x32xf32>
    %215 = arith.index_cast %182 : i32 to index
    %c0_58 = arith.constant 0 : index
    %216 = vector.load %arg8[%215, %c0_58] : memref<16x32xf32, #tpu.memory_space<vmem>>, vector<2x32xf32>
    tpu.vector_store %arg8[%215, %c0_58], %214 {strides = array<i32>} : memref<16x32xf32, #tpu.memory_space<vmem>>, vector<2x32xf32>,
    %c6_i32 = arith.constant 6 : i32
    %c2_i32_59 = arith.constant 2 : i32
    %217 = arith.muli %c6_i32, %c2_i32_59 : i32
    %218 = tpu.assume_multiple %217, 2 : i32
    %219 = arith.index_cast %218 : i32 to index
    %c0_60 = arith.constant 0 : index
    %220 = vector.load %arg1[%219, %c0_60] : memref<16x128xf32, #tpu.memory_space<vmem>>, vector<2x128xf32>
    %221 = arith.truncf %214 : vector<2x32xf32> to vector<2x32xbf16>
    %c0_61 = arith.constant 0 : index
    %c0_62 = arith.constant 0 : index
    %c0_63 = arith.constant 0 : index
    %222 = vector.load %arg2[%c0_61, %c0_62, %c0_63] : memref<2x32x128xbf16, #tpu.memory_space<vmem>>, vector<1x32x128xbf16>
    %223 = vector.shape_cast %222 : vector<1x32x128xbf16> to vector<32x128xbf16>
    %cst_64 = arith.constant dense<0.000000e+00> : vector<2x128xf32>
    %224 = tpu.matmul %221, %223, %cst_64 {dimension_numbers = #tpu.dot_dimension_numbers<[1], [0], [0], [1], [0, 0, 1, 1], [], []>} : vector<2x32xbf16>, vector<32x128xbf16>, vector<2x128xf32> -> vector<2x128xf32>
    %225 = arith.addf %220, %224 : vector<2x128xf32>
    %226 = vector.extract_strided_slice %225 {offsets = [0, 0], sizes = [2, 32], strides = [1, 1]} : vector<2x128xf32> to vector<2x32xf32>
    %227 = arith.negf %226 : vector<2x32xf32>
    %228 = math.exp %227 : vector<2x32xf32>
    %cst_65 = arith.constant 1.000000e+00 : f32
    %229 = vector.broadcast %cst_65 : f32 to vector<2x32xf32>
    %230 = arith.addf %229, %228 : vector<2x32xf32>
    %231 = arith.divf %229, %230 : vector<2x32xf32>
    %232 = vector.extract_strided_slice %225 {offsets = [0, 32], sizes = [2, 32], strides = [1, 1]} : vector<2x128xf32> to vector<2x32xf32>
    %233 = arith.negf %232 : vector<2x32xf32>
    %234 = math.exp %233 : vector<2x32xf32>
    %cst_66 = arith.constant 1.000000e+00 : f32
    %235 = vector.broadcast %cst_66 : f32 to vector<2x32xf32>
    %236 = arith.addf %235, %234 : vector<2x32xf32>
    %237 = arith.divf %235, %236 : vector<2x32xf32>
    %238 = vector.extract_strided_slice %225 {offsets = [0, 64], sizes = [2, 32], strides = [1, 1]} : vector<2x128xf32> to vector<2x32xf32>
    %239 = math.tanh %238 : vector<2x32xf32>
    %240 = vector.extract_strided_slice %225 {offsets = [0, 96], sizes = [2, 32], strides = [1, 1]} : vector<2x128xf32> to vector<2x32xf32>
    %241 = arith.negf %240 : vector<2x32xf32>
    %242 = math.exp %241 : vector<2x32xf32>
    %cst_67 = arith.constant 1.000000e+00 : f32
    %243 = vector.broadcast %cst_67 : f32 to vector<2x32xf32>
    %244 = arith.addf %243, %242 : vector<2x32xf32>
    %245 = arith.divf %243, %244 : vector<2x32xf32>
    %246 = arith.mulf %237, %212 : vector<2x32xf32>
    %247 = arith.mulf %231, %239 : vector<2x32xf32>
    %248 = arith.addf %246, %247 : vector<2x32xf32>
    %249 = math.tanh %248 : vector<2x32xf32>
    %250 = arith.mulf %245, %249 : vector<2x32xf32>
    %251 = arith.index_cast %218 : i32 to index
    %c0_68 = arith.constant 0 : index
    %252 = vector.load %arg8[%251, %c0_68] : memref<16x32xf32, #tpu.memory_space<vmem>>, vector<2x32xf32>
    tpu.vector_store %arg8[%251, %c0_68], %250 {strides = array<i32>} : memref<16x32xf32, #tpu.memory_space<vmem>>, vector<2x32xf32>,
    %c7_i32 = arith.constant 7 : i32
    %c2_i32_69 = arith.constant 2 : i32
    %253 = arith.muli %c7_i32, %c2_i32_69 : i32
    %254 = tpu.assume_multiple %253, 2 : i32
    %255 = arith.index_cast %254 : i32 to index
    %c0_70 = arith.constant 0 : index
    %256 = vector.load %arg1[%255, %c0_70] : memref<16x128xf32, #tpu.memory_space<vmem>>, vector<2x128xf32>
    %257 = arith.truncf %250 : vector<2x32xf32> to vector<2x32xbf16>
    %c0_71 = arith.constant 0 : index
    %c0_72 = arith.constant 0 : index
    %c0_73 = arith.constant 0 : index
    %258 = vector.load %arg2[%c0_71, %c0_72, %c0_73] : memref<2x32x128xbf16, #tpu.memory_space<vmem>>, vector<1x32x128xbf16>
    %259 = vector.shape_cast %258 : vector<1x32x128xbf16> to vector<32x128xbf16>
    %cst_74 = arith.constant dense<0.000000e+00> : vector<2x128xf32>
    %260 = tpu.matmul %257, %259, %cst_74 {dimension_numbers = #tpu.dot_dimension_numbers<[1], [0], [0], [1], [0, 0, 1, 1], [], []>} : vector<2x32xbf16>, vector<32x128xbf16>, vector<2x128xf32> -> vector<2x128xf32>
    %261 = arith.addf %256, %260 : vector<2x128xf32>
    %262 = vector.extract_strided_slice %261 {offsets = [0, 0], sizes = [2, 32], strides = [1, 1]} : vector<2x128xf32> to vector<2x32xf32>
    %263 = arith.negf %262 : vector<2x32xf32>
    %264 = math.exp %263 : vector<2x32xf32>
    %cst_75 = arith.constant 1.000000e+00 : f32
    %265 = vector.broadcast %cst_75 : f32 to vector<2x32xf32>
    %266 = arith.addf %265, %264 : vector<2x32xf32>
    %267 = arith.divf %265, %266 : vector<2x32xf32>
    %268 = vector.extract_strided_slice %261 {offsets = [0, 32], sizes = [2, 32], strides = [1, 1]} : vector<2x128xf32> to vector<2x32xf32>
    %269 = arith.negf %268 : vector<2x32xf32>
    %270 = math.exp %269 : vector<2x32xf32>
    %cst_76 = arith.constant 1.000000e+00 : f32
    %271 = vector.broadcast %cst_76 : f32 to vector<2x32xf32>
    %272 = arith.addf %271, %270 : vector<2x32xf32>
    %273 = arith.divf %271, %272 : vector<2x32xf32>
    %274 = vector.extract_strided_slice %261 {offsets = [0, 64], sizes = [2, 32], strides = [1, 1]} : vector<2x128xf32> to vector<2x32xf32>
    %275 = math.tanh %274 : vector<2x32xf32>
    %276 = vector.extract_strided_slice %261 {offsets = [0, 96], sizes = [2, 32], strides = [1, 1]} : vector<2x128xf32> to vector<2x32xf32>
    %277 = arith.negf %276 : vector<2x32xf32>
    %278 = math.exp %277 : vector<2x32xf32>
    %cst_77 = arith.constant 1.000000e+00 : f32
    %279 = vector.broadcast %cst_77 : f32 to vector<2x32xf32>
    %280 = arith.addf %279, %278 : vector<2x32xf32>
    %281 = arith.divf %279, %280 : vector<2x32xf32>
    %282 = arith.mulf %273, %248 : vector<2x32xf32>
    %283 = arith.mulf %267, %275 : vector<2x32xf32>
    %284 = arith.addf %282, %283 : vector<2x32xf32>
    %285 = math.tanh %284 : vector<2x32xf32>
    %286 = arith.mulf %281, %285 : vector<2x32xf32>
    %287 = arith.index_cast %254 : i32 to index
    %c0_78 = arith.constant 0 : index
    %288 = vector.load %arg8[%287, %c0_78] : memref<16x32xf32, #tpu.memory_space<vmem>>, vector<2x32xf32>
    tpu.vector_store %arg8[%287, %c0_78], %286 {strides = array<i32>} : memref<16x32xf32, #tpu.memory_space<vmem>>, vector<2x32xf32>,
    %c8_i32 = arith.constant 8 : i32
    %c0_79 = arith.constant 0 : index
    %c0_80 = arith.constant 0 : index
    %c0_81 = arith.constant 0 : index
    %289 = vector.load %arg6[%c0_79, %c0_80, %c0_81] : memref<2x2x32xf32, #tpu.memory_space<vmem>>, vector<1x2x32xf32>
    %290 = vector.shape_cast %289 : vector<1x2x32xf32> to vector<2x32xf32>
    %291 = vector.shape_cast %286 : vector<2x32xf32> to vector<1x2x32xf32>
    tpu.vector_store %arg6[%c0_79, %c0_80, %c0_81], %291 {strides = array<i32>} : memref<2x2x32xf32, #tpu.memory_space<vmem>>, vector<1x2x32xf32>,
    %c0_82 = arith.constant 0 : index
    %c0_83 = arith.constant 0 : index
    %c0_84 = arith.constant 0 : index
    %292 = vector.load %arg7[%c0_82, %c0_83, %c0_84] : memref<2x2x32xf32, #tpu.memory_space<vmem>>, vector<1x2x32xf32>
    %293 = vector.shape_cast %292 : vector<1x2x32xf32> to vector<2x32xf32>
    %294 = vector.shape_cast %284 : vector<2x32xf32> to vector<1x2x32xf32>
    tpu.vector_store %arg7[%c0_82, %c0_83, %c0_84], %294 {strides = array<i32>} : memref<2x2x32xf32, #tpu.memory_space<vmem>>, vector<1x2x32xf32>,
    %c0_85 = arith.constant 0 : index
    %c0_86 = arith.constant 0 : index
    %295 = vector.load %arg8[%c0_85, %c0_86] : memref<16x32xf32, #tpu.memory_space<vmem>>, vector<16x32xf32>
    %296 = arith.truncf %295 : vector<16x32xf32> to vector<16x32xbf16>
    %c0_87 = arith.constant 0 : index
    %c0_88 = arith.constant 0 : index
    %c0_89 = arith.constant 0 : index
    %297 = vector.load %arg3[%c0_87, %c0_88, %c0_89] : memref<1x32x128xbf16, #tpu.memory_space<vmem>>, vector<1x32x128xbf16>
    %298 = vector.shape_cast %297 : vector<1x32x128xbf16> to vector<32x128xbf16>
    %cst_90 = arith.constant dense<0.000000e+00> : vector<16x128xf32>
    %299 = tpu.matmul %296, %298, %cst_90 {dimension_numbers = #tpu.dot_dimension_numbers<[1], [0], [0], [1], [0, 0, 1, 1], [], []>} : vector<16x32xbf16>, vector<32x128xbf16>, vector<16x128xf32> -> vector<16x128xf32>
    %c0_91 = arith.constant 0 : index
    %c0_92 = arith.constant 0 : index
    %c0_93 = arith.constant 0 : index
    %300 = vector.load %arg4[%c0_91, %c0_92, %c0_93] : memref<1x1x128xf32, #tpu.memory_space<vmem>>, vector<1x1x128xf32>
    %301 = vector.shape_cast %300 : vector<1x1x128xf32> to vector<1x128xf32>
    %302 = vector.broadcast %301 : vector<1x128xf32> to vector<16x128xf32>
    %303 = arith.addf %299, %302 : vector<16x128xf32>
    %c0_94 = arith.constant 0 : index
    %c0_95 = arith.constant 0 : index
    %304 = vector.load %arg9[%c0_94, %c0_95] : memref<16x128xf32, #tpu.memory_space<vmem>>, vector<16x128xf32>
    tpu.vector_store %arg9[%c0_94, %c0_95], %303 {strides = array<i32>} : memref<16x128xf32, #tpu.memory_space<vmem>>, vector<16x128xf32>,
    %c0_i32_96 = arith.constant 0 : i32
    %c2_i32_97 = arith.constant 2 : i32
    %305 = arith.muli %c0_i32_96, %c2_i32_97 : i32
    %306 = tpu.assume_multiple %305, 2 : i32
    %307 = arith.index_cast %306 : i32 to index
    %c0_98 = arith.constant 0 : index
    %308 = vector.load %arg9[%307, %c0_98] : memref<16x128xf32, #tpu.memory_space<vmem>>, vector<2x128xf32>
    %309 = arith.truncf %0 : vector<2x32xf32> to vector<2x32xbf16>
    %c1 = arith.constant 1 : index
    %c0_99 = arith.constant 0 : index
    %c0_100 = arith.constant 0 : index
    %310 = vector.load %arg2[%c1, %c0_99, %c0_100] : memref<2x32x128xbf16, #tpu.memory_space<vmem>>, vector<1x32x128xbf16>
    %311 = vector.shape_cast %310 : vector<1x32x128xbf16> to vector<32x128xbf16>
    %cst_101 = arith.constant dense<0.000000e+00> : vector<2x128xf32>
    %312 = tpu.matmul %309, %311, %cst_101 {dimension_numbers = #tpu.dot_dimension_numbers<[1], [0], [0], [1], [0, 0, 1, 1], [], []>} : vector<2x32xbf16>, vector<32x128xbf16>, vector<2x128xf32> -> vector<2x128xf32>
    %313 = arith.addf %308, %312 : vector<2x128xf32>
    %314 = vector.extract_strided_slice %313 {offsets = [0, 0], sizes = [2, 32], strides = [1, 1]} : vector<2x128xf32> to vector<2x32xf32>
    %315 = arith.negf %314 : vector<2x32xf32>
    %316 = math.exp %315 : vector<2x32xf32>
    %cst_102 = arith.constant 1.000000e+00 : f32
    %317 = vector.broadcast %cst_102 : f32 to vector<2x32xf32>
    %318 = arith.addf %317, %316 : vector<2x32xf32>
    %319 = arith.divf %317, %318 : vector<2x32xf32>
    %320 = vector.extract_strided_slice %313 {offsets = [0, 32], sizes = [2, 32], strides = [1, 1]} : vector<2x128xf32> to vector<2x32xf32>
    %321 = arith.negf %320 : vector<2x32xf32>
    %322 = math.exp %321 : vector<2x32xf32>
    %cst_103 = arith.constant 1.000000e+00 : f32
    %323 = vector.broadcast %cst_103 : f32 to vector<2x32xf32>
    %324 = arith.addf %323, %322 : vector<2x32xf32>
    %325 = arith.divf %323, %324 : vector<2x32xf32>
    %326 = vector.extract_strided_slice %313 {offsets = [0, 64], sizes = [2, 32], strides = [1, 1]} : vector<2x128xf32> to vector<2x32xf32>
    %327 = math.tanh %326 : vector<2x32xf32>
    %328 = vector.extract_strided_slice %313 {offsets = [0, 96], sizes = [2, 32], strides = [1, 1]} : vector<2x128xf32> to vector<2x32xf32>
    %329 = arith.negf %328 : vector<2x32xf32>
    %330 = math.exp %329 : vector<2x32xf32>
    %cst_104 = arith.constant 1.000000e+00 : f32
    %331 = vector.broadcast %cst_104 : f32 to vector<2x32xf32>
    %332 = arith.addf %331, %330 : vector<2x32xf32>
    %333 = arith.divf %331, %332 : vector<2x32xf32>
    %334 = arith.mulf %325, %0 : vector<2x32xf32>
    %335 = arith.mulf %319, %327 : vector<2x32xf32>
    %336 = arith.addf %334, %335 : vector<2x32xf32>
    %337 = math.tanh %336 : vector<2x32xf32>
    %338 = arith.mulf %333, %337 : vector<2x32xf32>
    %339 = arith.index_cast %c0_i32_96 : i32 to index
    %c0_105 = arith.constant 0 : index
    %c0_106 = arith.constant 0 : index
    %340 = vector.load %arg5[%339, %c0_105, %c0_106] : memref<8x2x32xf32, #tpu.memory_space<vmem>>, vector<1x2x32xf32>
    %341 = vector.shape_cast %340 : vector<1x2x32xf32> to vector<2x32xf32>
    %342 = vector.shape_cast %338 : vector<2x32xf32> to vector<1x2x32xf32>
    tpu.vector_store %arg5[%339, %c0_105, %c0_106], %342 {strides = array<i32>} : memref<8x2x32xf32, #tpu.memory_space<vmem>>, vector<1x2x32xf32>,
    %c1_i32_107 = arith.constant 1 : i32
    %c2_i32_108 = arith.constant 2 : i32
    %343 = arith.muli %c1_i32_107, %c2_i32_108 : i32
    %344 = tpu.assume_multiple %343, 2 : i32
    %345 = arith.index_cast %344 : i32 to index
    %c0_109 = arith.constant 0 : index
    %346 = vector.load %arg9[%345, %c0_109] : memref<16x128xf32, #tpu.memory_space<vmem>>, vector<2x128xf32>
    %347 = arith.truncf %338 : vector<2x32xf32> to vector<2x32xbf16>
    %c1_110 = arith.constant 1 : index
    %c0_111 = arith.constant 0 : index
    %c0_112 = arith.constant 0 : index
    %348 = vector.load %arg2[%c1_110, %c0_111, %c0_112] : memref<2x32x128xbf16, #tpu.memory_space<vmem>>, vector<1x32x128xbf16>
    %349 = vector.shape_cast %348 : vector<1x32x128xbf16> to vector<32x128xbf16>
    %cst_113 = arith.constant dense<0.000000e+00> : vector<2x128xf32>
    %350 = tpu.matmul %347, %349, %cst_113 {dimension_numbers = #tpu.dot_dimension_numbers<[1], [0], [0], [1], [0, 0, 1, 1], [], []>} : vector<2x32xbf16>, vector<32x128xbf16>, vector<2x128xf32> -> vector<2x128xf32>
    %351 = arith.addf %346, %350 : vector<2x128xf32>
    %352 = vector.extract_strided_slice %351 {offsets = [0, 0], sizes = [2, 32], strides = [1, 1]} : vector<2x128xf32> to vector<2x32xf32>
    %353 = arith.negf %352 : vector<2x32xf32>
    %354 = math.exp %353 : vector<2x32xf32>
    %cst_114 = arith.constant 1.000000e+00 : f32
    %355 = vector.broadcast %cst_114 : f32 to vector<2x32xf32>
    %356 = arith.addf %355, %354 : vector<2x32xf32>
    %357 = arith.divf %355, %356 : vector<2x32xf32>
    %358 = vector.extract_strided_slice %351 {offsets = [0, 32], sizes = [2, 32], strides = [1, 1]} : vector<2x128xf32> to vector<2x32xf32>
    %359 = arith.negf %358 : vector<2x32xf32>
    %360 = math.exp %359 : vector<2x32xf32>
    %cst_115 = arith.constant 1.000000e+00 : f32
    %361 = vector.broadcast %cst_115 : f32 to vector<2x32xf32>
    %362 = arith.addf %361, %360 : vector<2x32xf32>
    %363 = arith.divf %361, %362 : vector<2x32xf32>
    %364 = vector.extract_strided_slice %351 {offsets = [0, 64], sizes = [2, 32], strides = [1, 1]} : vector<2x128xf32> to vector<2x32xf32>
    %365 = math.tanh %364 : vector<2x32xf32>
    %366 = vector.extract_strided_slice %351 {offsets = [0, 96], sizes = [2, 32], strides = [1, 1]} : vector<2x128xf32> to vector<2x32xf32>
    %367 = arith.negf %366 : vector<2x32xf32>
    %368 = math.exp %367 : vector<2x32xf32>
    %cst_116 = arith.constant 1.000000e+00 : f32
    %369 = vector.broadcast %cst_116 : f32 to vector<2x32xf32>
    %370 = arith.addf %369, %368 : vector<2x32xf32>
    %371 = arith.divf %369, %370 : vector<2x32xf32>
    %372 = arith.mulf %363, %336 : vector<2x32xf32>
    %373 = arith.mulf %357, %365 : vector<2x32xf32>
    %374 = arith.addf %372, %373 : vector<2x32xf32>
    %375 = math.tanh %374 : vector<2x32xf32>
    %376 = arith.mulf %371, %375 : vector<2x32xf32>
    %377 = arith.index_cast %c1_i32_107 : i32 to index
    %c0_117 = arith.constant 0 : index
    %c0_118 = arith.constant 0 : index
    %378 = vector.load %arg5[%377, %c0_117, %c0_118] : memref<8x2x32xf32, #tpu.memory_space<vmem>>, vector<1x2x32xf32>
    %379 = vector.shape_cast %378 : vector<1x2x32xf32> to vector<2x32xf32>
    %380 = vector.shape_cast %376 : vector<2x32xf32> to vector<1x2x32xf32>
    tpu.vector_store %arg5[%377, %c0_117, %c0_118], %380 {strides = array<i32>} : memref<8x2x32xf32, #tpu.memory_space<vmem>>, vector<1x2x32xf32>,
    %c2_i32_119 = arith.constant 2 : i32
    %c2_i32_120 = arith.constant 2 : i32
    %381 = arith.muli %c2_i32_119, %c2_i32_120 : i32
    %382 = tpu.assume_multiple %381, 2 : i32
    %383 = arith.index_cast %382 : i32 to index
    %c0_121 = arith.constant 0 : index
    %384 = vector.load %arg9[%383, %c0_121] : memref<16x128xf32, #tpu.memory_space<vmem>>, vector<2x128xf32>
    %385 = arith.truncf %376 : vector<2x32xf32> to vector<2x32xbf16>
    %c1_122 = arith.constant 1 : index
    %c0_123 = arith.constant 0 : index
    %c0_124 = arith.constant 0 : index
    %386 = vector.load %arg2[%c1_122, %c0_123, %c0_124] : memref<2x32x128xbf16, #tpu.memory_space<vmem>>, vector<1x32x128xbf16>
    %387 = vector.shape_cast %386 : vector<1x32x128xbf16> to vector<32x128xbf16>
    %cst_125 = arith.constant dense<0.000000e+00> : vector<2x128xf32>
    %388 = tpu.matmul %385, %387, %cst_125 {dimension_numbers = #tpu.dot_dimension_numbers<[1], [0], [0], [1], [0, 0, 1, 1], [], []>} : vector<2x32xbf16>, vector<32x128xbf16>, vector<2x128xf32> -> vector<2x128xf32>
    %389 = arith.addf %384, %388 : vector<2x128xf32>
    %390 = vector.extract_strided_slice %389 {offsets = [0, 0], sizes = [2, 32], strides = [1, 1]} : vector<2x128xf32> to vector<2x32xf32>
    %391 = arith.negf %390 : vector<2x32xf32>
    %392 = math.exp %391 : vector<2x32xf32>
    %cst_126 = arith.constant 1.000000e+00 : f32
    %393 = vector.broadcast %cst_126 : f32 to vector<2x32xf32>
    %394 = arith.addf %393, %392 : vector<2x32xf32>
    %395 = arith.divf %393, %394 : vector<2x32xf32>
    %396 = vector.extract_strided_slice %389 {offsets = [0, 32], sizes = [2, 32], strides = [1, 1]} : vector<2x128xf32> to vector<2x32xf32>
    %397 = arith.negf %396 : vector<2x32xf32>
    %398 = math.exp %397 : vector<2x32xf32>
    %cst_127 = arith.constant 1.000000e+00 : f32
    %399 = vector.broadcast %cst_127 : f32 to vector<2x32xf32>
    %400 = arith.addf %399, %398 : vector<2x32xf32>
    %401 = arith.divf %399, %400 : vector<2x32xf32>
    %402 = vector.extract_strided_slice %389 {offsets = [0, 64], sizes = [2, 32], strides = [1, 1]} : vector<2x128xf32> to vector<2x32xf32>
    %403 = math.tanh %402 : vector<2x32xf32>
    %404 = vector.extract_strided_slice %389 {offsets = [0, 96], sizes = [2, 32], strides = [1, 1]} : vector<2x128xf32> to vector<2x32xf32>
    %405 = arith.negf %404 : vector<2x32xf32>
    %406 = math.exp %405 : vector<2x32xf32>
    %cst_128 = arith.constant 1.000000e+00 : f32
    %407 = vector.broadcast %cst_128 : f32 to vector<2x32xf32>
    %408 = arith.addf %407, %406 : vector<2x32xf32>
    %409 = arith.divf %407, %408 : vector<2x32xf32>
    %410 = arith.mulf %401, %374 : vector<2x32xf32>
    %411 = arith.mulf %395, %403 : vector<2x32xf32>
    %412 = arith.addf %410, %411 : vector<2x32xf32>
    %413 = math.tanh %412 : vector<2x32xf32>
    %414 = arith.mulf %409, %413 : vector<2x32xf32>
    %415 = arith.index_cast %c2_i32_119 : i32 to index
    %c0_129 = arith.constant 0 : index
    %c0_130 = arith.constant 0 : index
    %416 = vector.load %arg5[%415, %c0_129, %c0_130] : memref<8x2x32xf32, #tpu.memory_space<vmem>>, vector<1x2x32xf32>
    %417 = vector.shape_cast %416 : vector<1x2x32xf32> to vector<2x32xf32>
    %418 = vector.shape_cast %414 : vector<2x32xf32> to vector<1x2x32xf32>
    tpu.vector_store %arg5[%415, %c0_129, %c0_130], %418 {strides = array<i32>} : memref<8x2x32xf32, #tpu.memory_space<vmem>>, vector<1x2x32xf32>,
    %c3_i32_131 = arith.constant 3 : i32
    %c2_i32_132 = arith.constant 2 : i32
    %419 = arith.muli %c3_i32_131, %c2_i32_132 : i32
    %420 = tpu.assume_multiple %419, 2 : i32
    %421 = arith.index_cast %420 : i32 to index
    %c0_133 = arith.constant 0 : index
    %422 = vector.load %arg9[%421, %c0_133] : memref<16x128xf32, #tpu.memory_space<vmem>>, vector<2x128xf32>
    %423 = arith.truncf %414 : vector<2x32xf32> to vector<2x32xbf16>
    %c1_134 = arith.constant 1 : index
    %c0_135 = arith.constant 0 : index
    %c0_136 = arith.constant 0 : index
    %424 = vector.load %arg2[%c1_134, %c0_135, %c0_136] : memref<2x32x128xbf16, #tpu.memory_space<vmem>>, vector<1x32x128xbf16>
    %425 = vector.shape_cast %424 : vector<1x32x128xbf16> to vector<32x128xbf16>
    %cst_137 = arith.constant dense<0.000000e+00> : vector<2x128xf32>
    %426 = tpu.matmul %423, %425, %cst_137 {dimension_numbers = #tpu.dot_dimension_numbers<[1], [0], [0], [1], [0, 0, 1, 1], [], []>} : vector<2x32xbf16>, vector<32x128xbf16>, vector<2x128xf32> -> vector<2x128xf32>
    %427 = arith.addf %422, %426 : vector<2x128xf32>
    %428 = vector.extract_strided_slice %427 {offsets = [0, 0], sizes = [2, 32], strides = [1, 1]} : vector<2x128xf32> to vector<2x32xf32>
    %429 = arith.negf %428 : vector<2x32xf32>
    %430 = math.exp %429 : vector<2x32xf32>
    %cst_138 = arith.constant 1.000000e+00 : f32
    %431 = vector.broadcast %cst_138 : f32 to vector<2x32xf32>
    %432 = arith.addf %431, %430 : vector<2x32xf32>
    %433 = arith.divf %431, %432 : vector<2x32xf32>
    %434 = vector.extract_strided_slice %427 {offsets = [0, 32], sizes = [2, 32], strides = [1, 1]} : vector<2x128xf32> to vector<2x32xf32>
    %435 = arith.negf %434 : vector<2x32xf32>
    %436 = math.exp %435 : vector<2x32xf32>
    %cst_139 = arith.constant 1.000000e+00 : f32
    %437 = vector.broadcast %cst_139 : f32 to vector<2x32xf32>
    %438 = arith.addf %437, %436 : vector<2x32xf32>
    %439 = arith.divf %437, %438 : vector<2x32xf32>
    %440 = vector.extract_strided_slice %427 {offsets = [0, 64], sizes = [2, 32], strides = [1, 1]} : vector<2x128xf32> to vector<2x32xf32>
    %441 = math.tanh %440 : vector<2x32xf32>
    %442 = vector.extract_strided_slice %427 {offsets = [0, 96], sizes = [2, 32], strides = [1, 1]} : vector<2x128xf32> to vector<2x32xf32>
    %443 = arith.negf %442 : vector<2x32xf32>
    %444 = math.exp %443 : vector<2x32xf32>
    %cst_140 = arith.constant 1.000000e+00 : f32
    %445 = vector.broadcast %cst_140 : f32 to vector<2x32xf32>
    %446 = arith.addf %445, %444 : vector<2x32xf32>
    %447 = arith.divf %445, %446 : vector<2x32xf32>
    %448 = arith.mulf %439, %412 : vector<2x32xf32>
    %449 = arith.mulf %433, %441 : vector<2x32xf32>
    %450 = arith.addf %448, %449 : vector<2x32xf32>
    %451 = math.tanh %450 : vector<2x32xf32>
    %452 = arith.mulf %447, %451 : vector<2x32xf32>
    %453 = arith.index_cast %c3_i32_131 : i32 to index
    %c0_141 = arith.constant 0 : index
    %c0_142 = arith.constant 0 : index
    %454 = vector.load %arg5[%453, %c0_141, %c0_142] : memref<8x2x32xf32, #tpu.memory_space<vmem>>, vector<1x2x32xf32>
    %455 = vector.shape_cast %454 : vector<1x2x32xf32> to vector<2x32xf32>
    %456 = vector.shape_cast %452 : vector<2x32xf32> to vector<1x2x32xf32>
    tpu.vector_store %arg5[%453, %c0_141, %c0_142], %456 {strides = array<i32>} : memref<8x2x32xf32, #tpu.memory_space<vmem>>, vector<1x2x32xf32>,
    %c4_i32_143 = arith.constant 4 : i32
    %c2_i32_144 = arith.constant 2 : i32
    %457 = arith.muli %c4_i32_143, %c2_i32_144 : i32
    %458 = tpu.assume_multiple %457, 2 : i32
    %459 = arith.index_cast %458 : i32 to index
    %c0_145 = arith.constant 0 : index
    %460 = vector.load %arg9[%459, %c0_145] : memref<16x128xf32, #tpu.memory_space<vmem>>, vector<2x128xf32>
    %461 = arith.truncf %452 : vector<2x32xf32> to vector<2x32xbf16>
    %c1_146 = arith.constant 1 : index
    %c0_147 = arith.constant 0 : index
    %c0_148 = arith.constant 0 : index
    %462 = vector.load %arg2[%c1_146, %c0_147, %c0_148] : memref<2x32x128xbf16, #tpu.memory_space<vmem>>, vector<1x32x128xbf16>
    %463 = vector.shape_cast %462 : vector<1x32x128xbf16> to vector<32x128xbf16>
    %cst_149 = arith.constant dense<0.000000e+00> : vector<2x128xf32>
    %464 = tpu.matmul %461, %463, %cst_149 {dimension_numbers = #tpu.dot_dimension_numbers<[1], [0], [0], [1], [0, 0, 1, 1], [], []>} : vector<2x32xbf16>, vector<32x128xbf16>, vector<2x128xf32> -> vector<2x128xf32>
    %465 = arith.addf %460, %464 : vector<2x128xf32>
    %466 = vector.extract_strided_slice %465 {offsets = [0, 0], sizes = [2, 32], strides = [1, 1]} : vector<2x128xf32> to vector<2x32xf32>
    %467 = arith.negf %466 : vector<2x32xf32>
    %468 = math.exp %467 : vector<2x32xf32>
    %cst_150 = arith.constant 1.000000e+00 : f32
    %469 = vector.broadcast %cst_150 : f32 to vector<2x32xf32>
    %470 = arith.addf %469, %468 : vector<2x32xf32>
    %471 = arith.divf %469, %470 : vector<2x32xf32>
    %472 = vector.extract_strided_slice %465 {offsets = [0, 32], sizes = [2, 32], strides = [1, 1]} : vector<2x128xf32> to vector<2x32xf32>
    %473 = arith.negf %472 : vector<2x32xf32>
    %474 = math.exp %473 : vector<2x32xf32>
    %cst_151 = arith.constant 1.000000e+00 : f32
    %475 = vector.broadcast %cst_151 : f32 to vector<2x32xf32>
    %476 = arith.addf %475, %474 : vector<2x32xf32>
    %477 = arith.divf %475, %476 : vector<2x32xf32>
    %478 = vector.extract_strided_slice %465 {offsets = [0, 64], sizes = [2, 32], strides = [1, 1]} : vector<2x128xf32> to vector<2x32xf32>
    %479 = math.tanh %478 : vector<2x32xf32>
    %480 = vector.extract_strided_slice %465 {offsets = [0, 96], sizes = [2, 32], strides = [1, 1]} : vector<2x128xf32> to vector<2x32xf32>
    %481 = arith.negf %480 : vector<2x32xf32>
    %482 = math.exp %481 : vector<2x32xf32>
    %cst_152 = arith.constant 1.000000e+00 : f32
    %483 = vector.broadcast %cst_152 : f32 to vector<2x32xf32>
    %484 = arith.addf %483, %482 : vector<2x32xf32>
    %485 = arith.divf %483, %484 : vector<2x32xf32>
    %486 = arith.mulf %477, %450 : vector<2x32xf32>
    %487 = arith.mulf %471, %479 : vector<2x32xf32>
    %488 = arith.addf %486, %487 : vector<2x32xf32>
    %489 = math.tanh %488 : vector<2x32xf32>
    %490 = arith.mulf %485, %489 : vector<2x32xf32>
    %491 = arith.index_cast %c4_i32_143 : i32 to index
    %c0_153 = arith.constant 0 : index
    %c0_154 = arith.constant 0 : index
    %492 = vector.load %arg5[%491, %c0_153, %c0_154] : memref<8x2x32xf32, #tpu.memory_space<vmem>>, vector<1x2x32xf32>
    %493 = vector.shape_cast %492 : vector<1x2x32xf32> to vector<2x32xf32>
    %494 = vector.shape_cast %490 : vector<2x32xf32> to vector<1x2x32xf32>
    tpu.vector_store %arg5[%491, %c0_153, %c0_154], %494 {strides = array<i32>} : memref<8x2x32xf32, #tpu.memory_space<vmem>>, vector<1x2x32xf32>,
    %c5_i32_155 = arith.constant 5 : i32
    %c2_i32_156 = arith.constant 2 : i32
    %495 = arith.muli %c5_i32_155, %c2_i32_156 : i32
    %496 = tpu.assume_multiple %495, 2 : i32
    %497 = arith.index_cast %496 : i32 to index
    %c0_157 = arith.constant 0 : index
    %498 = vector.load %arg9[%497, %c0_157] : memref<16x128xf32, #tpu.memory_space<vmem>>, vector<2x128xf32>
    %499 = arith.truncf %490 : vector<2x32xf32> to vector<2x32xbf16>
    %c1_158 = arith.constant 1 : index
    %c0_159 = arith.constant 0 : index
    %c0_160 = arith.constant 0 : index
    %500 = vector.load %arg2[%c1_158, %c0_159, %c0_160] : memref<2x32x128xbf16, #tpu.memory_space<vmem>>, vector<1x32x128xbf16>
    %501 = vector.shape_cast %500 : vector<1x32x128xbf16> to vector<32x128xbf16>
    %cst_161 = arith.constant dense<0.000000e+00> : vector<2x128xf32>
    %502 = tpu.matmul %499, %501, %cst_161 {dimension_numbers = #tpu.dot_dimension_numbers<[1], [0], [0], [1], [0, 0, 1, 1], [], []>} : vector<2x32xbf16>, vector<32x128xbf16>, vector<2x128xf32> -> vector<2x128xf32>
    %503 = arith.addf %498, %502 : vector<2x128xf32>
    %504 = vector.extract_strided_slice %503 {offsets = [0, 0], sizes = [2, 32], strides = [1, 1]} : vector<2x128xf32> to vector<2x32xf32>
    %505 = arith.negf %504 : vector<2x32xf32>
    %506 = math.exp %505 : vector<2x32xf32>
    %cst_162 = arith.constant 1.000000e+00 : f32
    %507 = vector.broadcast %cst_162 : f32 to vector<2x32xf32>
    %508 = arith.addf %507, %506 : vector<2x32xf32>
    %509 = arith.divf %507, %508 : vector<2x32xf32>
    %510 = vector.extract_strided_slice %503 {offsets = [0, 32], sizes = [2, 32], strides = [1, 1]} : vector<2x128xf32> to vector<2x32xf32>
    %511 = arith.negf %510 : vector<2x32xf32>
    %512 = math.exp %511 : vector<2x32xf32>
    %cst_163 = arith.constant 1.000000e+00 : f32
    %513 = vector.broadcast %cst_163 : f32 to vector<2x32xf32>
    %514 = arith.addf %513, %512 : vector<2x32xf32>
    %515 = arith.divf %513, %514 : vector<2x32xf32>
    %516 = vector.extract_strided_slice %503 {offsets = [0, 64], sizes = [2, 32], strides = [1, 1]} : vector<2x128xf32> to vector<2x32xf32>
    %517 = math.tanh %516 : vector<2x32xf32>
    %518 = vector.extract_strided_slice %503 {offsets = [0, 96], sizes = [2, 32], strides = [1, 1]} : vector<2x128xf32> to vector<2x32xf32>
    %519 = arith.negf %518 : vector<2x32xf32>
    %520 = math.exp %519 : vector<2x32xf32>
    %cst_164 = arith.constant 1.000000e+00 : f32
    %521 = vector.broadcast %cst_164 : f32 to vector<2x32xf32>
    %522 = arith.addf %521, %520 : vector<2x32xf32>
    %523 = arith.divf %521, %522 : vector<2x32xf32>
    %524 = arith.mulf %515, %488 : vector<2x32xf32>
    %525 = arith.mulf %509, %517 : vector<2x32xf32>
    %526 = arith.addf %524, %525 : vector<2x32xf32>
    %527 = math.tanh %526 : vector<2x32xf32>
    %528 = arith.mulf %523, %527 : vector<2x32xf32>
    %529 = arith.index_cast %c5_i32_155 : i32 to index
    %c0_165 = arith.constant 0 : index
    %c0_166 = arith.constant 0 : index
    %530 = vector.load %arg5[%529, %c0_165, %c0_166] : memref<8x2x32xf32, #tpu.memory_space<vmem>>, vector<1x2x32xf32>
    %531 = vector.shape_cast %530 : vector<1x2x32xf32> to vector<2x32xf32>
    %532 = vector.shape_cast %528 : vector<2x32xf32> to vector<1x2x32xf32>
    tpu.vector_store %arg5[%529, %c0_165, %c0_166], %532 {strides = array<i32>} : memref<8x2x32xf32, #tpu.memory_space<vmem>>, vector<1x2x32xf32>,
    %c6_i32_167 = arith.constant 6 : i32
    %c2_i32_168 = arith.constant 2 : i32
    %533 = arith.muli %c6_i32_167, %c2_i32_168 : i32
    %534 = tpu.assume_multiple %533, 2 : i32
    %535 = arith.index_cast %534 : i32 to index
    %c0_169 = arith.constant 0 : index
    %536 = vector.load %arg9[%535, %c0_169] : memref<16x128xf32, #tpu.memory_space<vmem>>, vector<2x128xf32>
    %537 = arith.truncf %528 : vector<2x32xf32> to vector<2x32xbf16>
    %c1_170 = arith.constant 1 : index
    %c0_171 = arith.constant 0 : index
    %c0_172 = arith.constant 0 : index
    %538 = vector.load %arg2[%c1_170, %c0_171, %c0_172] : memref<2x32x128xbf16, #tpu.memory_space<vmem>>, vector<1x32x128xbf16>
    %539 = vector.shape_cast %538 : vector<1x32x128xbf16> to vector<32x128xbf16>
    %cst_173 = arith.constant dense<0.000000e+00> : vector<2x128xf32>
    %540 = tpu.matmul %537, %539, %cst_173 {dimension_numbers = #tpu.dot_dimension_numbers<[1], [0], [0], [1], [0, 0, 1, 1], [], []>} : vector<2x32xbf16>, vector<32x128xbf16>, vector<2x128xf32> -> vector<2x128xf32>
    %541 = arith.addf %536, %540 : vector<2x128xf32>
    %542 = vector.extract_strided_slice %541 {offsets = [0, 0], sizes = [2, 32], strides = [1, 1]} : vector<2x128xf32> to vector<2x32xf32>
    %543 = arith.negf %542 : vector<2x32xf32>
    %544 = math.exp %543 : vector<2x32xf32>
    %cst_174 = arith.constant 1.000000e+00 : f32
    %545 = vector.broadcast %cst_174 : f32 to vector<2x32xf32>
    %546 = arith.addf %545, %544 : vector<2x32xf32>
    %547 = arith.divf %545, %546 : vector<2x32xf32>
    %548 = vector.extract_strided_slice %541 {offsets = [0, 32], sizes = [2, 32], strides = [1, 1]} : vector<2x128xf32> to vector<2x32xf32>
    %549 = arith.negf %548 : vector<2x32xf32>
    %550 = math.exp %549 : vector<2x32xf32>
    %cst_175 = arith.constant 1.000000e+00 : f32
    %551 = vector.broadcast %cst_175 : f32 to vector<2x32xf32>
    %552 = arith.addf %551, %550 : vector<2x32xf32>
    %553 = arith.divf %551, %552 : vector<2x32xf32>
    %554 = vector.extract_strided_slice %541 {offsets = [0, 64], sizes = [2, 32], strides = [1, 1]} : vector<2x128xf32> to vector<2x32xf32>
    %555 = math.tanh %554 : vector<2x32xf32>
    %556 = vector.extract_strided_slice %541 {offsets = [0, 96], sizes = [2, 32], strides = [1, 1]} : vector<2x128xf32> to vector<2x32xf32>
    %557 = arith.negf %556 : vector<2x32xf32>
    %558 = math.exp %557 : vector<2x32xf32>
    %cst_176 = arith.constant 1.000000e+00 : f32
    %559 = vector.broadcast %cst_176 : f32 to vector<2x32xf32>
    %560 = arith.addf %559, %558 : vector<2x32xf32>
    %561 = arith.divf %559, %560 : vector<2x32xf32>
    %562 = arith.mulf %553, %526 : vector<2x32xf32>
    %563 = arith.mulf %547, %555 : vector<2x32xf32>
    %564 = arith.addf %562, %563 : vector<2x32xf32>
    %565 = math.tanh %564 : vector<2x32xf32>
    %566 = arith.mulf %561, %565 : vector<2x32xf32>
    %567 = arith.index_cast %c6_i32_167 : i32 to index
    %c0_177 = arith.constant 0 : index
    %c0_178 = arith.constant 0 : index
    %568 = vector.load %arg5[%567, %c0_177, %c0_178] : memref<8x2x32xf32, #tpu.memory_space<vmem>>, vector<1x2x32xf32>
    %569 = vector.shape_cast %568 : vector<1x2x32xf32> to vector<2x32xf32>
    %570 = vector.shape_cast %566 : vector<2x32xf32> to vector<1x2x32xf32>
    tpu.vector_store %arg5[%567, %c0_177, %c0_178], %570 {strides = array<i32>} : memref<8x2x32xf32, #tpu.memory_space<vmem>>, vector<1x2x32xf32>,
    %c7_i32_179 = arith.constant 7 : i32
    %c2_i32_180 = arith.constant 2 : i32
    %571 = arith.muli %c7_i32_179, %c2_i32_180 : i32
    %572 = tpu.assume_multiple %571, 2 : i32
    %573 = arith.index_cast %572 : i32 to index
    %c0_181 = arith.constant 0 : index
    %574 = vector.load %arg9[%573, %c0_181] : memref<16x128xf32, #tpu.memory_space<vmem>>, vector<2x128xf32>
    %575 = arith.truncf %566 : vector<2x32xf32> to vector<2x32xbf16>
    %c1_182 = arith.constant 1 : index
    %c0_183 = arith.constant 0 : index
    %c0_184 = arith.constant 0 : index
    %576 = vector.load %arg2[%c1_182, %c0_183, %c0_184] : memref<2x32x128xbf16, #tpu.memory_space<vmem>>, vector<1x32x128xbf16>
    %577 = vector.shape_cast %576 : vector<1x32x128xbf16> to vector<32x128xbf16>
    %cst_185 = arith.constant dense<0.000000e+00> : vector<2x128xf32>
    %578 = tpu.matmul %575, %577, %cst_185 {dimension_numbers = #tpu.dot_dimension_numbers<[1], [0], [0], [1], [0, 0, 1, 1], [], []>} : vector<2x32xbf16>, vector<32x128xbf16>, vector<2x128xf32> -> vector<2x128xf32>
    %579 = arith.addf %574, %578 : vector<2x128xf32>
    %580 = vector.extract_strided_slice %579 {offsets = [0, 0], sizes = [2, 32], strides = [1, 1]} : vector<2x128xf32> to vector<2x32xf32>
    %581 = arith.negf %580 : vector<2x32xf32>
    %582 = math.exp %581 : vector<2x32xf32>
    %cst_186 = arith.constant 1.000000e+00 : f32
    %583 = vector.broadcast %cst_186 : f32 to vector<2x32xf32>
    %584 = arith.addf %583, %582 : vector<2x32xf32>
    %585 = arith.divf %583, %584 : vector<2x32xf32>
    %586 = vector.extract_strided_slice %579 {offsets = [0, 32], sizes = [2, 32], strides = [1, 1]} : vector<2x128xf32> to vector<2x32xf32>
    %587 = arith.negf %586 : vector<2x32xf32>
    %588 = math.exp %587 : vector<2x32xf32>
    %cst_187 = arith.constant 1.000000e+00 : f32
    %589 = vector.broadcast %cst_187 : f32 to vector<2x32xf32>
    %590 = arith.addf %589, %588 : vector<2x32xf32>
    %591 = arith.divf %589, %590 : vector<2x32xf32>
    %592 = vector.extract_strided_slice %579 {offsets = [0, 64], sizes = [2, 32], strides = [1, 1]} : vector<2x128xf32> to vector<2x32xf32>
    %593 = math.tanh %592 : vector<2x32xf32>
    %594 = vector.extract_strided_slice %579 {offsets = [0, 96], sizes = [2, 32], strides = [1, 1]} : vector<2x128xf32> to vector<2x32xf32>
    %595 = arith.negf %594 : vector<2x32xf32>
    %596 = math.exp %595 : vector<2x32xf32>
    %cst_188 = arith.constant 1.000000e+00 : f32
    %597 = vector.broadcast %cst_188 : f32 to vector<2x32xf32>
    %598 = arith.addf %597, %596 : vector<2x32xf32>
    %599 = arith.divf %597, %598 : vector<2x32xf32>
    %600 = arith.mulf %591, %564 : vector<2x32xf32>
    %601 = arith.mulf %585, %593 : vector<2x32xf32>
    %602 = arith.addf %600, %601 : vector<2x32xf32>
    %603 = math.tanh %602 : vector<2x32xf32>
    %604 = arith.mulf %599, %603 : vector<2x32xf32>
    %605 = arith.index_cast %c7_i32_179 : i32 to index
    %c0_189 = arith.constant 0 : index
    %c0_190 = arith.constant 0 : index
    %606 = vector.load %arg5[%605, %c0_189, %c0_190] : memref<8x2x32xf32, #tpu.memory_space<vmem>>, vector<1x2x32xf32>
    %607 = vector.shape_cast %606 : vector<1x2x32xf32> to vector<2x32xf32>
    %608 = vector.shape_cast %604 : vector<2x32xf32> to vector<1x2x32xf32>
    tpu.vector_store %arg5[%605, %c0_189, %c0_190], %608 {strides = array<i32>} : memref<8x2x32xf32, #tpu.memory_space<vmem>>, vector<1x2x32xf32>,
    %c8_i32_191 = arith.constant 8 : i32
    %c1_192 = arith.constant 1 : index
    %c0_193 = arith.constant 0 : index
    %c0_194 = arith.constant 0 : index
    %609 = vector.load %arg6[%c1_192, %c0_193, %c0_194] : memref<2x2x32xf32, #tpu.memory_space<vmem>>, vector<1x2x32xf32>
    %610 = vector.shape_cast %609 : vector<1x2x32xf32> to vector<2x32xf32>
    %611 = vector.shape_cast %604 : vector<2x32xf32> to vector<1x2x32xf32>
    tpu.vector_store %arg6[%c1_192, %c0_193, %c0_194], %611 {strides = array<i32>} : memref<2x2x32xf32, #tpu.memory_space<vmem>>, vector<1x2x32xf32>,
    %c1_195 = arith.constant 1 : index
    %c0_196 = arith.constant 0 : index
    %c0_197 = arith.constant 0 : index
    %612 = vector.load %arg7[%c1_195, %c0_196, %c0_197] : memref<2x2x32xf32, #tpu.memory_space<vmem>>, vector<1x2x32xf32>
    %613 = vector.shape_cast %612 : vector<1x2x32xf32> to vector<2x32xf32>
    %614 = vector.shape_cast %602 : vector<2x32xf32> to vector<1x2x32xf32>
    tpu.vector_store %arg7[%c1_195, %c0_196, %c0_197], %614 {strides = array<i32>} : memref<2x2x32xf32, #tpu.memory_space<vmem>>, vector<1x2x32xf32>,
    return
  }
  func.func @transform_0(%arg0: i32) -> (i32, i32) {
    %c0_i32 = arith.constant 0 : i32
    %c0_i32_0 = arith.constant 0 : i32
    %c0_i32_1 = arith.constant 0 : i32
    return %c0_i32, %c0_i32_0 : i32, i32
  }
  func.func @transform_1(%arg0: i32) -> (i32, i32, i32) {
    %c0_i32 = arith.constant 0 : i32
    %c0_i32_0 = arith.constant 0 : i32
    %c0_i32_1 = arith.constant 0 : i32
    %c0_i32_2 = arith.constant 0 : i32
    return %c0_i32, %c0_i32_0, %c0_i32_1 : i32, i32, i32
  }
  func.func @transform_2(%arg0: i32) -> (i32, i32, i32) {
    %c0_i32 = arith.constant 0 : i32
    %c0_i32_0 = arith.constant 0 : i32
    %c0_i32_1 = arith.constant 0 : i32
    %c0_i32_2 = arith.constant 0 : i32
    return %c0_i32, %c0_i32_0, %c0_i32_1 : i32, i32, i32
  }
  func.func @transform_3(%arg0: i32) -> (i32, i32, i32) {
    %c0_i32 = arith.constant 0 : i32
    %c0_i32_0 = arith.constant 0 : i32
    %c0_i32_1 = arith.constant 0 : i32
    %c0_i32_2 = arith.constant 0 : i32
    return %c0_i32, %c0_i32_0, %c0_i32_1 : i32, i32, i32
  }
  func.func @transform_4(%arg0: i32) -> (i32, i32, i32) {
    %c0_i32 = arith.constant 0 : i32
    %c0_i32_0 = arith.constant 0 : i32
    %c0_i32_1 = arith.constant 0 : i32
    %c0_i32_2 = arith.constant 0 : i32
    return %c0_i32, %c0_i32_0, %c0_i32_1 : i32, i32, i32
  }
  func.func @transform_5(%arg0: i32) -> (i32, i32, i32) {
    %c0_i32 = arith.constant 0 : i32
    %c0_i32_0 = arith.constant 0 : i32
    %c0_i32_1 = arith.constant 0 : i32
    %c0_i32_2 = arith.constant 0 : i32
    return %c0_i32, %c0_i32_0, %c0_i32_1 : i32, i32, i32
  }
  func.func @transform_6(%arg0: i32) -> (i32, i32, i32) {
    %c0_i32 = arith.constant 0 : i32
    %c0_i32_0 = arith.constant 0 : i32
    %c0_i32_1 = arith.constant 0 : i32
    %c0_i32_2 = arith.constant 0 : i32
    return %c0_i32, %c0_i32_0, %c0_i32_1 : i32, i32, i32
  }
}

</mosaic_0001>

<llo_original>
// kernel: lstm_unit_forward.1
$region0: #{lstm_unit_forward.1}
  #allocation0 [shape = 'u32[]', space=smem, size = 0x4, offset = 0x4, fixed_abs, tag = 'smem constant byte address 0x4 - core index']
  #allocation1 [shape = 'u32[72,128]{1,0:T(1,128)}', space=vmem, size = 0x9000, scoped, tag = 'internal scratch']
  #allocation2 [shape = 'f32[16,32]{1,0:T(8,128)}', space=vmem, size = 0x2000, scoped, tag = 'scratch operand']
  #allocation3 [shape = 'f32[16,128]{1,0:T(8,128)}', space=vmem, size = 0x2000, scoped, tag = 'scratch operand']
  %s0 = inlined_call_operand.vmem [shape: f32[16,128], index: 0, kind: input, shape index: {}]
  %s1 = inlined_call_operand.vmem [shape: bf16[2,32,128], index: 1, kind: input, shape index: {}]
  %s2 = inlined_call_operand.vmem [shape: bf16[1,32,128], index: 2, kind: input, shape index: {}]
  %s3 = inlined_call_operand.vmem [shape: f32[1,1,128], index: 3, kind: input, shape index: {}]
  %s4 = inlined_call_operand.hbm [shape: f32[8,2,32], index: 4, kind: output, shape index: {0}]
  %s5 = inlined_call_operand.hbm [shape: f32[2,2,32], index: 5, kind: output, shape index: {1}]
  %s6 = inlined_call_operand.hbm [shape: f32[2,2,32], index: 6, kind: output, shape index: {2}]
  %7 = xla_tuple %s4, %s5, %s6
  %s8 = sld [smem:[#allocation0]]
  $region42: #{lstm_unit_forward.1} parent=0
    _
  %s10 = ssub.s32 1, %s8
  %s11 = scalar_select 0, %s10, %s8
  $region1: #{lstm_unit_forward.1} parent=0
    #allocation4 [shape = 'u8[8192]{0}', space=vmem, size = 0x2000, scoped, tag = 'output window, operand 0, single buffered']
    #allocation5 [shape = 's32[1]{0}', space=sflag, size = 0x4, scoped, tag = 'scoped memory for lstm_unit_forward.1']
    #allocation6 [shape = 'u8[2048]{0}', space=vmem, size = 0x800, scoped, tag = 'output window, operand 1, single buffered']
    #allocation7 [shape = 's32[1]{0}', space=sflag, size = 0x4, scoped, tag = 'scoped memory for lstm_unit_forward.1']
    #allocation8 [shape = 'u8[2048]{0}', space=vmem, size = 0x800, scoped, tag = 'output window, operand 2, single buffered']
    %12 = vsyncpa [#allocation5], 0
    %13 = vsyncpa [#allocation7], 0
    // Predicated region
    $region2: #{lstm_unit_forward.1} parent=1 // pred_check
      _
    $region3: #{lstm_unit_forward.1} parent=1 // pred_check_branch
      %15 = sbr.rel (0) target = $region5
    $region4: #{lstm_unit_forward.1} parent=1 // pred_region
      _
    $region5: #{lstm_unit_forward.1} parent=1 // pred_fallthru
      _
    // Predicated region
    $region6: #{lstm_unit_forward.1} parent=1 // pred_check
      _
    $region7: #{lstm_unit_forward.1} parent=1 // pred_check_branch
      %17 = sbr.rel (0) target = $region9
    $region8: #{lstm_unit_forward.1} parent=1 // pred_region
      _
    $region9: #{lstm_unit_forward.1} parent=1 // pred_fallthru
      _
    // Predicated region
    $region10: #{lstm_unit_forward.1} parent=1 // pred_check
      _
    $region11: #{lstm_unit_forward.1} parent=1 // pred_check_branch
      %19 = sbr.rel (0) target = $region13
    $region12: #{lstm_unit_forward.1} parent=1 // pred_region
      _
    $region13: #{lstm_unit_forward.1} parent=1 // pred_fallthru
      _
    // Predicated region
    $region14: #{lstm_unit_forward.1} parent=1 // pred_check
      _
    $region15: #{lstm_unit_forward.1} parent=1 // pred_check_branch
      %21 = sbr.rel (0) target = $region17
    $region16: #{lstm_unit_forward.1} parent=1 // pred_region
      _
    $region17: #{lstm_unit_forward.1} parent=1 // pred_fallthru
      _
    %v23 = vld [vmem:[%s0] sm:$0x3]
    %v24 = vld [vmem:[%s1] sm:$0xf]
    %v25 = vld [vmem:[%s1 + $0x4] sm:$0xf]
    %v26 = vld [vmem:[%s1 + $0x8] sm:$0xf]
    %v27 = vld [vmem:[%s1 + $0xc] sm:$0xf]
    %v32 = vunpack.c.l.b16 %v24
    %v33 = vunpack.c.l.b16 %v25
    %v34 = vunpack.c.l.b16 %v26
    %v35 = vunpack.c.l.b16 %v27
    %v36 = vpack.c.b16 %v33, %v32
    %v37 = vpack.c.b16 %v35, %v34
    %vm40 = vcmask 261120
    %v42 = vsel %vm40, 0, 0
    %44 = vmatpush.bf16.msra.mxu0 0
    %45 = vmatpush.bf16.msra.mxu0 0
    %46 = vmatpush.bf16.msra.mxu0 0
    %47 = vmatpush.bf16.msra.mxu0 0
    %48 = vmatpush.bf16.msra.mxu0 0
    %49 = vmatpush.bf16.msra.mxu0 0
    %50 = vmatpush.bf16.msra.mxu0 %v37
    %51 = vmatpush.bf16.msra.mxu0 %v36
    %52 = vmatmul.bf16.gmra.mxu0 %v42
    %v53 = vpop.f32.mrf.mxu0
    %v54 = vadd.f32 0.0, %v53
    %v55 = vpop.f32.mrf.mxu0
    %56 = vdwg.mxu0
    %v57 = vadd.f32 %v23, %v54
    %v58 = vxor.u32 %v57, 2147483648
    %v59 = vmul.f32 %v58, 1.442695
    %v60 = vpow.pop %v59
    %v61 = vadd.f32 %v60, 1.0
    %v62 = vrcp.pop %v61
    %v63 = vmul.f32 %v61, %v62
    %v64 = vsub.f32 1.0, %v63
    %v65 = vmul.f32 %v62, %v64
    %v66 = vadd.f32 %v62, %v65
    %vm67 = vweird.f32 %v61
    %vm68 = vweird.f32 %v62
    %vm69 = vmor %vm67, %vm68
    %v70 = vsel %vm69, %v62, %v66
    %v71 = vand.u32 2147483647, %v61
    %vm72 = vcmp.eq.f32.partialorder %v71, 8.507059e+37
    %v73 = vand.u32 %v61, 2147483648
    %v74 = vor.u32 1.1754944e-38, %v73
    %v75 = vsel %vm72, %v74, %v70
    %v76 = vmul.f32 1.0, %v75
    %v77 = vtanh.pop %v57
    %v78 = vmul.f32 %v76, 0.0
    %80 = vrot.lane.b32.xlu0 %v77, 64
    %v81 = vpop.permute.xlu0 %80
    %v83 = vmul.f32 %v76, %v81
    %85 = vrot.lane.b32.xlu0 %v83, 32
    %v86 = vpop.permute.xlu0 %85
    %v88 = vadd.f32 %v78, %v86
    %v89 = vtanh.pop %v88
    %91 = vrot.lane.b32.xlu0 %v89, 64
    %v92 = vpop.permute.xlu0 %91
    %v94 = vmul.f32 %v76, %v92
    %96 = vrot.lane.b32.xlu0 %v94, 32
    %v97 = vpop.permute.xlu0 %96
    %vm99 = vcmask 254976
    %100 = vst.msk [vmem:[#allocation2] sm:$0x3] %vm99, %v97
    %s101 = scalar_lea.vmem %s0, 2
    %v102 = vld [vmem:[%s101] sm:$0x3]
    %v103 = vpack.c.bf16 %v94, %v94
    %v104 = vld [vmem:[%s1] sm:$0xf]
    %v105 = vld [vmem:[%s1 + $0x4] sm:$0xf]
    %v106 = vld [vmem:[%s1 + $0x8] sm:$0xf]
    %v107 = vld [vmem:[%s1 + $0xc] sm:$0xf]
    %109 = vrot.lane.b32.xlu0 %v103, 32
    %v110 = vpop.permute.xlu0 %109
    %v115 = vunpack.c.l.b16 %v104
    %v116 = vunpack.c.l.b16 %v105
    %v117 = vunpack.c.l.b16 %v106
    %v118 = vunpack.c.l.b16 %v107
    %v119 = vpack.c.b16 %v116, %v115
    %v120 = vpack.c.b16 %v118, %v117
    %v124 = vsel %vm40, %v110, 0
    %126 = vmatpush.bf16.msra.mxu0 0
    %127 = vmatpush.bf16.msra.mxu0 0
    %128 = vmatpush.bf16.msra.mxu0 0
    %129 = vmatpush.bf16.msra.mxu0 0
    %130 = vmatpush.bf16.msra.mxu0 0
    %131 = vmatpush.bf16.msra.mxu0 0
    %132 = vmatpush.bf16.msra.mxu0 %v120
    %133 = vmatpush.bf16.msra.mxu0 %v119
    %134 = vmatmul.bf16.gmra.mxu0 %v124
    %v135 = vpop.f32.mrf.mxu0
    %v136 = vadd.f32 0.0, %v135
    %v137 = vpop.f32.mrf.mxu0
    %138 = vdwg.mxu0
    %v139 = vadd.f32 %v102, %v136
    %v140 = vxor.u32 %v139, 2147483648
    %v141 = vmul.f32 %v140, 1.442695
    %v142 = vpow.pop %v141
    %v143 = vadd.f32 %v142, 1.0
    %v144 = vrcp.pop %v143
    %v145 = vmul.f32 %v143, %v144
    %v146 = vsub.f32 1.0, %v145
    %v147 = vmul.f32 %v144, %v146
    %v148 = vadd.f32 %v144, %v147
    %vm149 = vweird.f32 %v143
    %vm150 = vweird.f32 %v144
    %vm151 = vmor %vm149, %vm150
    %v152 = vsel %vm151, %v144, %v148
    %v153 = vand.u32 2147483647, %v143
    %vm154 = vcmp.eq.f32.partialorder %v153, 8.507059e+37
    %v155 = vand.u32 %v143, 2147483648
    %v156 = vor.u32 1.1754944e-38, %v155
    %v157 = vsel %vm154, %v156, %v152
    %v158 = vmul.f32 1.0, %v157
    %v159 = vtanh.pop %v139
    %v160 = vmul.f32 %v158, %v88
    %162 = vrot.lane.b32.xlu0 %v159, 64
    %v163 = vpop.permute.xlu0 %162
    %v165 = vmul.f32 %v158, %v163
    %167 = vrot.lane.b32.xlu0 %v165, 32
    %v168 = vpop.permute.xlu0 %167
    %v170 = vadd.f32 %v160, %v168
    %v171 = vtanh.pop %v170
    %173 = vrot.lane.b32.xlu0 %v171, 64
    %v174 = vpop.permute.xlu0 %173
    %v176 = vmul.f32 %v158, %v174
    %178 = vrot.lane.b32.xlu0 %v176, 32
    %v179 = vpop.permute.xlu0 %178
    %s181 = scalar_lea.vmem [#allocation2], 2
    %182 = vst.msk [vmem:[%s181] sm:$0x3] %vm99, %v179
    %s183 = scalar_lea.vmem %s0, 4
    %v184 = vld [vmem:[%s183] sm:$0x3]
    %v185 = vpack.c.bf16 %v176, %v176
    %v186 = vld [vmem:[%s1] sm:$0xf]
    %v187 = vld [vmem:[%s1 + $0x4] sm:$0xf]
    %v188 = vld [vmem:[%s1 + $0x8] sm:$0xf]
    %v189 = vld [vmem:[%s1 + $0xc] sm:$0xf]
    %191 = vrot.lane.b32.xlu0 %v185, 32
    %v192 = vpop.permute.xlu0 %191
    %v197 = vunpack.c.l.b16 %v186
    %v198 = vunpack.c.l.b16 %v187
    %v199 = vunpack.c.l.b16 %v188
    %v200 = vunpack.c.l.b16 %v189
    %v201 = vpack.c.b16 %v198, %v197
    %v202 = vpack.c.b16 %v200, %v199
    %v206 = vsel %vm40, %v192, 0
    %208 = vmatpush.bf16.msra.mxu0 0
    %209 = vmatpush.bf16.msra.mxu0 0
    %210 = vmatpush.bf16.msra.mxu0 0
    %211 = vmatpush.bf16.msra.mxu0 0
    %212 = vmatpush.bf16.msra.mxu0 0
    %213 = vmatpush.bf16.msra.mxu0 0
    %214 = vmatpush.bf16.msra.mxu0 %v202
    %215 = vmatpush.bf16.msra.mxu0 %v201
    %216 = vmatmul.bf16.gmra.mxu0 %v206
    %v217 = vpop.f32.mrf.mxu0
    %v218 = vadd.f32 0.0, %v217
    %v219 = vpop.f32.mrf.mxu0
    %220 = vdwg.mxu0
    %v221 = vadd.f32 %v184, %v218
    %v222 = vxor.u32 %v221, 2147483648
    %v223 = vmul.f32 %v222, 1.442695
    %v224 = vpow.pop %v223
    %v225 = vadd.f32 %v224, 1.0
    %v226 = vrcp.pop %v225
    %v227 = vmul.f32 %v225, %v226
    %v228 = vsub.f32 1.0, %v227
    %v229 = vmul.f32 %v226, %v228
    %v230 = vadd.f32 %v226, %v229
    %vm231 = vweird.f32 %v225
    %vm232 = vweird.f32 %v226
    %vm233 = vmor %vm231, %vm232
    %v234 = vsel %vm233, %v226, %v230
    %v235 = vand.u32 2147483647, %v225
    %vm236 = vcmp.eq.f32.partialorder %v235, 8.507059e+37
    %v237 = vand.u32 %v225, 2147483648
    %v238 = vor.u32 1.1754944e-38, %v237
    %v239 = vsel %vm236, %v238, %v234
    %v240 = vmul.f32 1.0, %v239
    %v241 = vtanh.pop %v221
    %v242 = vmul.f32 %v240, %v170
    %244 = vrot.lane.b32.xlu0 %v241, 64
    %v245 = vpop.permute.xlu0 %244
    %v247 = vmul.f32 %v240, %v245
    %249 = vrot.lane.b32.xlu0 %v247, 32
    %v250 = vpop.permute.xlu0 %249
    %v252 = vadd.f32 %v242, %v250
    %v253 = vtanh.pop %v252
    %255 = vrot.lane.b32.xlu0 %v253, 64
    %v256 = vpop.permute.xlu0 %255
    %v258 = vmul.f32 %v240, %v256
    %260 = vrot.lane.b32.xlu0 %v258, 32
    %v261 = vpop.permute.xlu0 %260
    %s263 = scalar_lea.vmem [#allocation2], 4
    %264 = vst.msk [vmem:[%s263] sm:$0x3] %vm99, %v261
    %s265 = scalar_lea.vmem %s0, 6
    %v266 = vld [vmem:[%s265] sm:$0x3]
    %v267 = vpack.c.bf16 %v258, %v258
    %v268 = vld [vmem:[%s1] sm:$0xf]
    %v269 = vld [vmem:[%s1 + $0x4] sm:$0xf]
    %v270 = vld [vmem:[%s1 + $0x8] sm:$0xf]
    %v271 = vld [vmem:[%s1 + $0xc] sm:$0xf]
    %273 = vrot.lane.b32.xlu0 %v267, 32
    %v274 = vpop.permute.xlu0 %273
    %v279 = vunpack.c.l.b16 %v268
    %v280 = vunpack.c.l.b16 %v269
    %v281 = vunpack.c.l.b16 %v270
    %v282 = vunpack.c.l.b16 %v271
    %v283 = vpack.c.b16 %v280, %v279
    %v284 = vpack.c.b16 %v282, %v281
    %v288 = vsel %vm40, %v274, 0
    %290 = vmatpush.bf16.msra.mxu0 0
    %291 = vmatpush.bf16.msra.mxu0 0
    %292 = vmatpush.bf16.msra.mxu0 0
    %293 = vmatpush.bf16.msra.mxu0 0
    %294 = vmatpush.bf16.msra.mxu0 0
    %295 = vmatpush.bf16.msra.mxu0 0
    %296 = vmatpush.bf16.msra.mxu0 %v284
    %297 = vmatpush.bf16.msra.mxu0 %v283
    %298 = vmatmul.bf16.gmra.mxu0 %v288
    %v299 = vpop.f32.mrf.mxu0
    %v300 = vadd.f32 0.0, %v299
    %v301 = vpop.f32.mrf.mxu0
    %302 = vdwg.mxu0
    %v303 = vadd.f32 %v266, %v300
    %v304 = vxor.u32 %v303, 2147483648
    %v305 = vmul.f32 %v304, 1.442695
    %v306 = vpow.pop %v305
    %v307 = vadd.f32 %v306, 1.0
    %v308 = vrcp.pop %v307
    %v309 = vmul.f32 %v307, %v308
    %v310 = vsub.f32 1.0, %v309
    %v311 = vmul.f32 %v308, %v310
    %v312 = vadd.f32 %v308, %v311
    %vm313 = vweird.f32 %v307
    %vm314 = vweird.f32 %v308
    %vm315 = vmor %vm313, %vm314
    %v316 = vsel %vm315, %v308, %v312
    %v317 = vand.u32 2147483647, %v307
    %vm318 = vcmp.eq.f32.partialorder %v317, 8.507059e+37
    %v319 = vand.u32 %v307, 2147483648
    %v320 = vor.u32 1.1754944e-38, %v319
    %v321 = vsel %vm318, %v320, %v316
    %v322 = vmul.f32 1.0, %v321
    %v323 = vtanh.pop %v303
    %v324 = vmul.f32 %v322, %v252
    %326 = vrot.lane.b32.xlu0 %v323, 64
    %v327 = vpop.permute.xlu0 %326
    %v329 = vmul.f32 %v322, %v327
    %331 = vrot.lane.b32.xlu0 %v329, 32
    %v332 = vpop.permute.xlu0 %331
    %v334 = vadd.f32 %v324, %v332
    %v335 = vtanh.pop %v334
    %337 = vrot.lane.b32.xlu0 %v335, 64
    %v338 = vpop.permute.xlu0 %337
    %v340 = vmul.f32 %v322, %v338
    %342 = vrot.lane.b32.xlu0 %v340, 32
    %v343 = vpop.permute.xlu0 %342
    %s345 = scalar_lea.vmem [#allocation2], 6
    %346 = vst.msk [vmem:[%s345] sm:$0x3] %vm99, %v343
    %s347 = scalar_lea.vmem %s0, 8
    %v348 = vld [vmem:[%s347] sm:$0x3]
    %v349 = vpack.c.bf16 %v340, %v340
    %v350 = vld [vmem:[%s1] sm:$0xf]
    %v351 = vld [vmem:[%s1 + $0x4] sm:$0xf]
    %v352 = vld [vmem:[%s1 + $0x8] sm:$0xf]
    %v353 = vld [vmem:[%s1 + $0xc] sm:$0xf]
    %355 = vrot.lane.b32.xlu0 %v349, 32
    %v356 = vpop.permute.xlu0 %355
    %v361 = vunpack.c.l.b16 %v350
    %v362 = vunpack.c.l.b16 %v351
    %v363 = vunpack.c.l.b16 %v352
    %v364 = vunpack.c.l.b16 %v353
    %v365 = vpack.c.b16 %v362, %v361
    %v366 = vpack.c.b16 %v364, %v363
    %v370 = vsel %vm40, %v356, 0
    %372 = vmatpush.bf16.msra.mxu0 0
    %373 = vmatpush.bf16.msra.mxu0 0
    %374 = vmatpush.bf16.msra.mxu0 0
    %375 = vmatpush.bf16.msra.mxu0 0
    %376 = vmatpush.bf16.msra.mxu0 0
    %377 = vmatpush.bf16.msra.mxu0 0
    %378 = vmatpush.bf16.msra.mxu0 %v366
    %379 = vmatpush.bf16.msra.mxu0 %v365
    %380 = vmatmul.bf16.gmra.mxu0 %v370
    %v381 = vpop.f32.mrf.mxu0
    %v382 = vadd.f32 0.0, %v381
    %v383 = vpop.f32.mrf.mxu0
    %384 = vdwg.mxu0
    %v385 = vadd.f32 %v348, %v382
    %v386 = vxor.u32 %v385, 2147483648
    %v387 = vmul.f32 %v386, 1.442695
    %v388 = vpow.pop %v387
    %v389 = vadd.f32 %v388, 1.0
    %v390 = vrcp.pop %v389
    %v391 = vmul.f32 %v389, %v390
    %v392 = vsub.f32 1.0, %v391
    %v393 = vmul.f32 %v390, %v392
    %v394 = vadd.f32 %v390, %v393
    %vm395 = vweird.f32 %v389
    %vm396 = vweird.f32 %v390
    %vm397 = vmor %vm395, %vm396
    %v398 = vsel %vm397, %v390, %v394
    %v399 = vand.u32 2147483647, %v389
    %vm400 = vcmp.eq.f32.partialorder %v399, 8.507059e+37
    %v401 = vand.u32 %v389, 2147483648
    %v402 = vor.u32 1.1754944e-38, %v401
    %v403 = vsel %vm400, %v402, %v398
    %v404 = vmul.f32 1.0, %v403
    %v405 = vtanh.pop %v385
    %v406 = vmul.f32 %v404, %v334
    %408 = vrot.lane.b32.xlu0 %v405, 64
    %v409 = vpop.permute.xlu0 %408
    %v411 = vmul.f32 %v404, %v409
    %413 = vrot.lane.b32.xlu0 %v411, 32
    %v414 = vpop.permute.xlu0 %413
    %v416 = vadd.f32 %v406, %v414
    %v417 = vtanh.pop %v416
    %419 = vrot.lane.b32.xlu0 %v417, 64
    %v420 = vpop.permute.xlu0 %419
    %v422 = vmul.f32 %v404, %v420
    %424 = vrot.lane.b32.xlu0 %v422, 32
    %v425 = vpop.permute.xlu0 %424
    %s427 = scalar_lea.vmem [#allocation2], 8
    %428 = vst.msk [vmem:[%s427] sm:$0x3] %vm99, %v425
    %s429 = scalar_lea.vmem %s0, 10
    %v430 = vld [vmem:[%s429] sm:$0x3]
    %v431 = vpack.c.bf16 %v422, %v422
    %v432 = vld [vmem:[%s1] sm:$0xf]
    %v433 = vld [vmem:[%s1 + $0x4] sm:$0xf]
    %v434 = vld [vmem:[%s1 + $0x8] sm:$0xf]
    %v435 = vld [vmem:[%s1 + $0xc] sm:$0xf]
    %437 = vrot.lane.b32.xlu0 %v431, 32
    %v438 = vpop.permute.xlu0 %437
    %v443 = vunpack.c.l.b16 %v432
    %v444 = vunpack.c.l.b16 %v433
    %v445 = vunpack.c.l.b16 %v434
    %v446 = vunpack.c.l.b16 %v435
    %v447 = vpack.c.b16 %v444, %v443
    %v448 = vpack.c.b16 %v446, %v445
    %v452 = vsel %vm40, %v438, 0
    %454 = vmatpush.bf16.msra.mxu0 0
    %455 = vmatpush.bf16.msra.mxu0 0
    %456 = vmatpush.bf16.msra.mxu0 0
    %457 = vmatpush.bf16.msra.mxu0 0
    %458 = vmatpush.bf16.msra.mxu0 0
    %459 = vmatpush.bf16.msra.mxu0 0
    %460 = vmatpush.bf16.msra.mxu0 %v448
    %461 = vmatpush.bf16.msra.mxu0 %v447
    %462 = vmatmul.bf16.gmra.mxu0 %v452
    %v463 = vpop.f32.mrf.mxu0
    %v464 = vadd.f32 0.0, %v463
    %v465 = vpop.f32.mrf.mxu0
    %466 = vdwg.mxu0
    %v467 = vadd.f32 %v430, %v464
    %v468 = vxor.u32 %v467, 2147483648
    %v469 = vmul.f32 %v468, 1.442695
    %v470 = vpow.pop %v469
    %v471 = vadd.f32 %v470, 1.0
    %v472 = vrcp.pop %v471
    %v473 = vmul.f32 %v471, %v472
    %v474 = vsub.f32 1.0, %v473
    %v475 = vmul.f32 %v472, %v474
    %v476 = vadd.f32 %v472, %v475
    %vm477 = vweird.f32 %v471
    %vm478 = vweird.f32 %v472
    %vm479 = vmor %vm477, %vm478
    %v480 = vsel %vm479, %v472, %v476
    %v481 = vand.u32 2147483647, %v471
    %vm482 = vcmp.eq.f32.partialorder %v481, 8.507059e+37
    %v483 = vand.u32 %v471, 2147483648
    %v484 = vor.u32 1.1754944e-38, %v483
    %v485 = vsel %vm482, %v484, %v480
    %v486 = vmul.f32 1.0, %v485
    %v487 = vtanh.pop %v467
    %v488 = vmul.f32 %v486, %v416
    %490 = vrot.lane.b32.xlu0 %v487, 64
    %v491 = vpop.permute.xlu0 %490
    %v493 = vmul.f32 %v486, %v491
    %495 = vrot.lane.b32.xlu0 %v493, 32
    %v496 = vpop.permute.xlu0 %495
    %v498 = vadd.f32 %v488, %v496
    %v499 = vtanh.pop %v498
    %501 = vrot.lane.b32.xlu0 %v499, 64
    %v502 = vpop.permute.xlu0 %501
    %v504 = vmul.f32 %v486, %v502
    %506 = vrot.lane.b32.xlu0 %v504, 32
    %v507 = vpop.permute.xlu0 %506
    %s509 = scalar_lea.vmem [#allocation2], 10
    %510 = vst.msk [vmem:[%s509] sm:$0x3] %vm99, %v507
    %s511 = scalar_lea.vmem %s0, 12
    %v512 = vld [vmem:[%s511] sm:$0x3]
    %v513 = vpack.c.bf16 %v504, %v504
    %v514 = vld [vmem:[%s1] sm:$0xf]
    %v515 = vld [vmem:[%s1 + $0x4] sm:$0xf]
    %v516 = vld [vmem:[%s1 + $0x8] sm:$0xf]
    %v517 = vld [vmem:[%s1 + $0xc] sm:$0xf]
    %519 = vrot.lane.b32.xlu0 %v513, 32
    %v520 = vpop.permute.xlu0 %519
    %v525 = vunpack.c.l.b16 %v514
    %v526 = vunpack.c.l.b16 %v515
    %v527 = vunpack.c.l.b16 %v516
    %v528 = vunpack.c.l.b16 %v517
    %v529 = vpack.c.b16 %v526, %v525
    %v530 = vpack.c.b16 %v528, %v527
    %v534 = vsel %vm40, %v520, 0
    %536 = vmatpush.bf16.msra.mxu0 0
    %537 = vmatpush.bf16.msra.mxu0 0
    %538 = vmatpush.bf16.msra.mxu0 0
    %539 = vmatpush.bf16.msra.mxu0 0
    %540 = vmatpush.bf16.msra.mxu0 0
    %541 = vmatpush.bf16.msra.mxu0 0
    %542 = vmatpush.bf16.msra.mxu0 %v530
    %543 = vmatpush.bf16.msra.mxu0 %v529
    %544 = vmatmul.bf16.gmra.mxu0 %v534
    %v545 = vpop.f32.mrf.mxu0
    %v546 = vadd.f32 0.0, %v545
    %v547 = vpop.f32.mrf.mxu0
    %548 = vdwg.mxu0
    %v549 = vadd.f32 %v512, %v546
    %v550 = vxor.u32 %v549, 2147483648
    %v551 = vmul.f32 %v550, 1.442695
    %v552 = vpow.pop %v551
    %v553 = vadd.f32 %v552, 1.0
    %v554 = vrcp.pop %v553
    %v555 = vmul.f32 %v553, %v554
    %v556 = vsub.f32 1.0, %v555
    %v557 = vmul.f32 %v554, %v556
    %v558 = vadd.f32 %v554, %v557
    %vm559 = vweird.f32 %v553
    %vm560 = vweird.f32 %v554
    %vm561 = vmor %vm559, %vm560
    %v562 = vsel %vm561, %v554, %v558
    %v563 = vand.u32 2147483647, %v553
    %vm564 = vcmp.eq.f32.partialorder %v563, 8.507059e+37
    %v565 = vand.u32 %v553, 2147483648
    %v566 = vor.u32 1.1754944e-38, %v565
    %v567 = vsel %vm564, %v566, %v562
    %v568 = vmul.f32 1.0, %v567
    %v569 = vtanh.pop %v549
    %v570 = vmul.f32 %v568, %v498
    %572 = vrot.lane.b32.xlu0 %v569, 64
    %v573 = vpop.permute.xlu0 %572
    %v575 = vmul.f32 %v568, %v573
    %577 = vrot.lane.b32.xlu0 %v575, 32
    %v578 = vpop.permute.xlu0 %577
    %v580 = vadd.f32 %v570, %v578
    %v581 = vtanh.pop %v580
    %583 = vrot.lane.b32.xlu0 %v581, 64
    %v584 = vpop.permute.xlu0 %583
    %v586 = vmul.f32 %v568, %v584
    %588 = vrot.lane.b32.xlu0 %v586, 32
    %v589 = vpop.permute.xlu0 %588
    %s591 = scalar_lea.vmem [#allocation2], 12
    %592 = vst.msk [vmem:[%s591] sm:$0x3] %vm99, %v589
    %s593 = scalar_lea.vmem %s0, 14
    %v594 = vld [vmem:[%s593] sm:$0x3]
    %v595 = vpack.c.bf16 %v586, %v586
    %v596 = vld [vmem:[%s1] sm:$0xf]
    %v597 = vld [vmem:[%s1 + $0x4] sm:$0xf]
    %v598 = vld [vmem:[%s1 + $0x8] sm:$0xf]
    %v599 = vld [vmem:[%s1 + $0xc] sm:$0xf]
    %601 = vrot.lane.b32.xlu0 %v595, 32
    %v602 = vpop.permute.xlu0 %601
    %v607 = vunpack.c.l.b16 %v596
    %v608 = vunpack.c.l.b16 %v597
    %v609 = vunpack.c.l.b16 %v598
    %v610 = vunpack.c.l.b16 %v599
    %v611 = vpack.c.b16 %v608, %v607
    %v612 = vpack.c.b16 %v610, %v609
    %v616 = vsel %vm40, %v602, 0
    %618 = vmatpush.bf16.msra.mxu0 0
    %619 = vmatpush.bf16.msra.mxu0 0
    %620 = vmatpush.bf16.msra.mxu0 0
    %621 = vmatpush.bf16.msra.mxu0 0
    %622 = vmatpush.bf16.msra.mxu0 0
    %623 = vmatpush.bf16.msra.mxu0 0
    %624 = vmatpush.bf16.msra.mxu0 %v612
    %625 = vmatpush.bf16.msra.mxu0 %v611
    %626 = vmatmul.bf16.gmra.mxu0 %v616
    %v627 = vpop.f32.mrf.mxu0
    %v628 = vadd.f32 0.0, %v627
    %v629 = vpop.f32.mrf.mxu0
    %630 = vdwg.mxu0
    %v631 = vadd.f32 %v594, %v628
    %v632 = vxor.u32 %v631, 2147483648
    %v633 = vmul.f32 %v632, 1.442695
    %v634 = vpow.pop %v633
    %v635 = vadd.f32 %v634, 1.0
    %v636 = vrcp.pop %v635
    %v637 = vmul.f32 %v635, %v636
    %v638 = vsub.f32 1.0, %v637
    %v639 = vmul.f32 %v636, %v638
    %v640 = vadd.f32 %v636, %v639
    %vm641 = vweird.f32 %v635
    %vm642 = vweird.f32 %v636
    %vm643 = vmor %vm641, %vm642
    %v644 = vsel %vm643, %v636, %v640
    %v645 = vand.u32 2147483647, %v635
    %vm646 = vcmp.eq.f32.partialorder %v645, 8.507059e+37
    %v647 = vand.u32 %v635, 2147483648
    %v648 = vor.u32 1.1754944e-38, %v647
    %v649 = vsel %vm646, %v648, %v644
    %v650 = vmul.f32 1.0, %v649
    %v651 = vtanh.pop %v631
    %v652 = vmul.f32 %v650, %v580
    %654 = vrot.lane.b32.xlu0 %v651, 64
    %v655 = vpop.permute.xlu0 %654
    %v657 = vmul.f32 %v650, %v655
    %659 = vrot.lane.b32.xlu0 %v657, 32
    %v660 = vpop.permute.xlu0 %659
    %v662 = vadd.f32 %v652, %v660
    %v663 = vtanh.pop %v662
    %665 = vrot.lane.b32.xlu0 %v663, 64
    %v666 = vpop.permute.xlu0 %665
    %v668 = vmul.f32 %v650, %v666
    %670 = vrot.lane.b32.xlu0 %v668, 32
    %v671 = vpop.permute.xlu0 %670
    %s673 = scalar_lea.vmem [#allocation2], 14
    %674 = vst.msk [vmem:[%s673] sm:$0x3] %vm99, %v671
    %675 = vst.msk [vmem:[#allocation6] sm:$0x3] %vm99, %v671
    %677 = vrot.lane.b32.xlu0 %v662, 96
    %v678 = vpop.permute.xlu0 %677
    %680 = vst.msk [vmem:[#allocation8] sm:$0x3] %vm99, %v678
    %v681 = vld [vmem:[#allocation2] sm:$0xff]
    %v682 = vld [vmem:[#allocation2 + $0x8] sm:$0xff]
    %v683 = vpack.c.bf16 %v682, %v681
    %v684 = vld [vmem:[%s2] sm:$0xf]
    %v685 = vld [vmem:[%s2 + $0x4] sm:$0xf]
    %v686 = vld [vmem:[%s2 + $0x8] sm:$0xf]
    %v687 = vld [vmem:[%s2 + $0xc] sm:$0xf]
    %v688 = vld [vmem:[%s3] sm:$0x1]
    %v690 = vperm.slane %v688, 0
    %v696 = vunpack.c.l.b16 %v684
    %v697 = vunpack.c.l.b16 %v685
    %v698 = vunpack.c.l.b16 %v686
    %v699 = vunpack.c.l.b16 %v687
    %v700 = vpack.c.b16 %v697, %v696
    %v701 = vpack.c.b16 %v699, %v698
    %v705 = vsel %vm40, %v683, 0
    %707 = vmatpush.bf16.msra.mxu0 0
    %708 = vmatpush.bf16.msra.mxu0 0
    %709 = vmatpush.bf16.msra.mxu0 0
    %710 = vmatpush.bf16.msra.mxu0 0
    %711 = vmatpush.bf16.msra.mxu0 0
    %712 = vmatpush.bf16.msra.mxu0 0
    %713 = vmatpush.bf16.msra.mxu0 %v701
    %714 = vmatpush.bf16.msra.mxu0 %v700
    %715 = vmatmul.bf16.gmra.mxu0 %v705
    %v716 = vpop.f32.mrf.mxu0
    %v717 = vadd.f32 %v690, %v716
    %v718 = vpop.f32.mrf.mxu0
    %v719 = vadd.f32 %v690, %v718
    %720 = vdwg.mxu0
    %721 = vst [vmem:[#allocation3] sm:$0xff] %v717
    %722 = vst [vmem:[#allocation3 + $0x8] sm:$0xff] %v719
    %v723 = vld [vmem:[#allocation3] sm:$0x3]
    %s724 = scalar_lea.vmem %s1, 16
    %v725 = vld [vmem:[%s724] sm:$0xf]
    %v726 = vld [vmem:[%s724 + $0x4] sm:$0xf]
    %v727 = vld [vmem:[%s724 + $0x8] sm:$0xf]
    %v728 = vld [vmem:[%s724 + $0xc] sm:$0xf]
    %v733 = vunpack.c.l.b16 %v725
    %v734 = vunpack.c.l.b16 %v726
    %v735 = vunpack.c.l.b16 %v727
    %v736 = vunpack.c.l.b16 %v728
    %v737 = vpack.c.b16 %v734, %v733
    %v738 = vpack.c.b16 %v736, %v735
    %741 = vmatpush.bf16.msra.mxu0 0
    %742 = vmatpush.bf16.msra.mxu0 0
    %743 = vmatpush.bf16.msra.mxu0 0
    %744 = vmatpush.bf16.msra.mxu0 0
    %745 = vmatpush.bf16.msra.mxu0 0
    %746 = vmatpush.bf16.msra.mxu0 0
    %747 = vmatpush.bf16.msra.mxu0 %v738
    %748 = vmatpush.bf16.msra.mxu0 %v737
    %749 = vmatmul.bf16.gmra.mxu0 %v42
    %v750 = vpop.f32.mrf.mxu0
    %v751 = vadd.f32 0.0, %v750
    %v752 = vpop.f32.mrf.mxu0
    %753 = vdwg.mxu0
    %v754 = vadd.f32 %v723, %v751
    %v755 = vxor.u32 %v754, 2147483648
    %v756 = vmul.f32 %v755, 1.442695
    %v757 = vpow.pop %v756
    %v758 = vadd.f32 %v757, 1.0
    %v759 = vrcp.pop %v758
    %v760 = vmul.f32 %v758, %v759
    %v761 = vsub.f32 1.0, %v760
    %v762 = vmul.f32 %v759, %v761
    %v763 = vadd.f32 %v759, %v762
    %vm764 = vweird.f32 %v758
    %vm765 = vweird.f32 %v759
    %vm766 = vmor %vm764, %vm765
    %v767 = vsel %vm766, %v759, %v763
    %v768 = vand.u32 2147483647, %v758
    %vm769 = vcmp.eq.f32.partialorder %v768, 8.507059e+37
    %v770 = vand.u32 %v758, 2147483648
    %v771 = vor.u32 1.1754944e-38, %v770
    %v772 = vsel %vm769, %v771, %v767
    %v773 = vmul.f32 1.0, %v772
    %v774 = vtanh.pop %v754
    %v775 = vmul.f32 %v773, 0.0
    %777 = vrot.lane.b32.xlu0 %v774, 64
    %v778 = vpop.permute.xlu0 %777
    %v780 = vmul.f32 %v773, %v778
    %782 = vrot.lane.b32.xlu0 %v780, 32
    %v783 = vpop.permute.xlu0 %782
    %v785 = vadd.f32 %v775, %v783
    %v786 = vtanh.pop %v785
    %788 = vrot.lane.b32.xlu0 %v786, 64
    %v789 = vpop.permute.xlu0 %788
    %v791 = vmul.f32 %v773, %v789
    %793 = vrot.lane.b32.xlu0 %v791, 32
    %v794 = vpop.permute.xlu0 %793
    %796 = vst.msk [vmem:[#allocation4] sm:$0x3] %vm99, %v794
    %s797 = scalar_lea.vmem [#allocation3], 2
    %v798 = vld [vmem:[%s797] sm:$0x3]
    %v799 = vpack.c.bf16 %v791, %v791
    %v800 = vld [vmem:[%s724] sm:$0xf]
    %v801 = vld [vmem:[%s724 + $0x4] sm:$0xf]
    %v802 = vld [vmem:[%s724 + $0x8] sm:$0xf]
    %v803 = vld [vmem:[%s724 + $0xc] sm:$0xf]
    %805 = vrot.lane.b32.xlu0 %v799, 32
    %v806 = vpop.permute.xlu0 %805
    %v811 = vunpack.c.l.b16 %v800
    %v812 = vunpack.c.l.b16 %v801
    %v813 = vunpack.c.l.b16 %v802
    %v814 = vunpack.c.l.b16 %v803
    %v815 = vpack.c.b16 %v812, %v811
    %v816 = vpack.c.b16 %v814, %v813
    %v820 = vsel %vm40, %v806, 0
    %822 = vmatpush.bf16.msra.mxu0 0
    %823 = vmatpush.bf16.msra.mxu0 0
    %824 = vmatpush.bf16.msra.mxu0 0
    %825 = vmatpush.bf16.msra.mxu0 0
    %826 = vmatpush.bf16.msra.mxu0 0
    %827 = vmatpush.bf16.msra.mxu0 0
    %828 = vmatpush.bf16.msra.mxu0 %v816
    %829 = vmatpush.bf16.msra.mxu0 %v815
    %830 = vmatmul.bf16.gmra.mxu0 %v820
    %v831 = vpop.f32.mrf.mxu0
    %v832 = vadd.f32 0.0, %v831
    %v833 = vpop.f32.mrf.mxu0
    %834 = vdwg.mxu0
    %v835 = vadd.f32 %v798, %v832
    %v836 = vxor.u32 %v835, 2147483648
    %v837 = vmul.f32 %v836, 1.442695
    %v838 = vpow.pop %v837
    %v839 = vadd.f32 %v838, 1.0
    %v840 = vrcp.pop %v839
    %v841 = vmul.f32 %v839, %v840
    %v842 = vsub.f32 1.0, %v841
    %v843 = vmul.f32 %v840, %v842
    %v844 = vadd.f32 %v840, %v843
    %vm845 = vweird.f32 %v839
    %vm846 = vweird.f32 %v840
    %vm847 = vmor %vm845, %vm846
    %v848 = vsel %vm847, %v840, %v844
    %v849 = vand.u32 2147483647, %v839
    %vm850 = vcmp.eq.f32.partialorder %v849, 8.507059e+37
    %v851 = vand.u32 %v839, 2147483648
    %v852 = vor.u32 1.1754944e-38, %v851
    %v853 = vsel %vm850, %v852, %v848
    %v854 = vmul.f32 1.0, %v853
    %v855 = vtanh.pop %v835
    %v856 = vmul.f32 %v854, %v785
    %858 = vrot.lane.b32.xlu0 %v855, 64
    %v859 = vpop.permute.xlu0 %858
    %v861 = vmul.f32 %v854, %v859
    %863 = vrot.lane.b32.xlu0 %v861, 32
    %v864 = vpop.permute.xlu0 %863
    %v866 = vadd.f32 %v856, %v864
    %v867 = vtanh.pop %v866
    %869 = vrot.lane.b32.xlu0 %v867, 64
    %v870 = vpop.permute.xlu0 %869
    %v872 = vmul.f32 %v854, %v870
    %874 = vrot.lane.b32.xlu0 %v872, 32
    %v875 = vpop.permute.xlu0 %874
    %s877 = scalar_lea.vmem [#allocation4], 2
    %878 = vst.msk [vmem:[%s877] sm:$0x3] %vm99, %v875
    %s879 = scalar_lea.vmem [#allocation3], 4
    %v880 = vld [vmem:[%s879] sm:$0x3]
    %v881 = vpack.c.bf16 %v872, %v872
    %v882 = vld [vmem:[%s724] sm:$0xf]
    %v883 = vld [vmem:[%s724 + $0x4] sm:$0xf]
    %v884 = vld [vmem:[%s724 + $0x8] sm:$0xf]
    %v885 = vld [vmem:[%s724 + $0xc] sm:$0xf]
    %887 = vrot.lane.b32.xlu0 %v881, 32
    %v888 = vpop.permute.xlu0 %887
    %v893 = vunpack.c.l.b16 %v882
    %v894 = vunpack.c.l.b16 %v883
    %v895 = vunpack.c.l.b16 %v884
    %v896 = vunpack.c.l.b16 %v885
    %v897 = vpack.c.b16 %v894, %v893
    %v898 = vpack.c.b16 %v896, %v895
    %v902 = vsel %vm40, %v888, 0
    %904 = vmatpush.bf16.msra.mxu0 0
    %905 = vmatpush.bf16.msra.mxu0 0
    %906 = vmatpush.bf16.msra.mxu0 0
    %907 = vmatpush.bf16.msra.mxu0 0
    %908 = vmatpush.bf16.msra.mxu0 0
    %909 = vmatpush.bf16.msra.mxu0 0
    %910 = vmatpush.bf16.msra.mxu0 %v898
    %911 = vmatpush.bf16.msra.mxu0 %v897
    %912 = vmatmul.bf16.gmra.mxu0 %v902
    %v913 = vpop.f32.mrf.mxu0
    %v914 = vadd.f32 0.0, %v913
    %v915 = vpop.f32.mrf.mxu0
    %916 = vdwg.mxu0
    %v917 = vadd.f32 %v880, %v914
    %v918 = vxor.u32 %v917, 2147483648
    %v919 = vmul.f32 %v918, 1.442695
    %v920 = vpow.pop %v919
    %v921 = vadd.f32 %v920, 1.0
    %v922 = vrcp.pop %v921
    %v923 = vmul.f32 %v921, %v922
    %v924 = vsub.f32 1.0, %v923
    %v925 = vmul.f32 %v922, %v924
    %v926 = vadd.f32 %v922, %v925
    %vm927 = vweird.f32 %v921
    %vm928 = vweird.f32 %v922
    %vm929 = vmor %vm927, %vm928
    %v930 = vsel %vm929, %v922, %v926
    %v931 = vand.u32 2147483647, %v921
    %vm932 = vcmp.eq.f32.partialorder %v931, 8.507059e+37
    %v933 = vand.u32 %v921, 2147483648
    %v934 = vor.u32 1.1754944e-38, %v933
    %v935 = vsel %vm932, %v934, %v930
    %v936 = vmul.f32 1.0, %v935
    %v937 = vtanh.pop %v917
    %v938 = vmul.f32 %v936, %v866
    %940 = vrot.lane.b32.xlu0 %v937, 64
    %v941 = vpop.permute.xlu0 %940
    %v943 = vmul.f32 %v936, %v941
    %945 = vrot.lane.b32.xlu0 %v943, 32
    %v946 = vpop.permute.xlu0 %945
    %v948 = vadd.f32 %v938, %v946
    %v949 = vtanh.pop %v948
    %951 = vrot.lane.b32.xlu0 %v949, 64
    %v952 = vpop.permute.xlu0 %951
    %v954 = vmul.f32 %v936, %v952
    %956 = vrot.lane.b32.xlu0 %v954, 32
    %v957 = vpop.permute.xlu0 %956
    %s959 = scalar_lea.vmem [#allocation4], 4
    %960 = vst.msk [vmem:[%s959] sm:$0x3] %vm99, %v957
    %s961 = scalar_lea.vmem [#allocation3], 6
    %v962 = vld [vmem:[%s961] sm:$0x3]
    %v963 = vpack.c.bf16 %v954, %v954
    %v964 = vld [vmem:[%s724] sm:$0xf]
    %v965 = vld [vmem:[%s724 + $0x4] sm:$0xf]
    %v966 = vld [vmem:[%s724 + $0x8] sm:$0xf]
    %v967 = vld [vmem:[%s724 + $0xc] sm:$0xf]
    %969 = vrot.lane.b32.xlu0 %v963, 32
    %v970 = vpop.permute.xlu0 %969
    %v975 = vunpack.c.l.b16 %v964
    %v976 = vunpack.c.l.b16 %v965
    %v977 = vunpack.c.l.b16 %v966
    %v978 = vunpack.c.l.b16 %v967
    %v979 = vpack.c.b16 %v976, %v975
    %v980 = vpack.c.b16 %v978, %v977
    %v984 = vsel %vm40, %v970, 0
    %986 = vmatpush.bf16.msra.mxu0 0
    %987 = vmatpush.bf16.msra.mxu0 0
    %988 = vmatpush.bf16.msra.mxu0 0
    %989 = vmatpush.bf16.msra.mxu0 0
    %990 = vmatpush.bf16.msra.mxu0 0
    %991 = vmatpush.bf16.msra.mxu0 0
    %992 = vmatpush.bf16.msra.mxu0 %v980
    %993 = vmatpush.bf16.msra.mxu0 %v979
    %994 = vmatmul.bf16.gmra.mxu0 %v984
    %v995 = vpop.f32.mrf.mxu0
    %v996 = vadd.f32 0.0, %v995
    %v997 = vpop.f32.mrf.mxu0
    %998 = vdwg.mxu0
    %v999 = vadd.f32 %v962, %v996
    %v1000 = vxor.u32 %v999, 2147483648
    %v1001 = vmul.f32 %v1000, 1.442695
    %v1002 = vpow.pop %v1001
    %v1003 = vadd.f32 %v1002, 1.0
    %v1004 = vrcp.pop %v1003
    %v1005 = vmul.f32 %v1003, %v1004
    %v1006 = vsub.f32 1.0, %v1005
    %v1007 = vmul.f32 %v1004, %v1006
    %v1008 = vadd.f32 %v1004, %v1007
    %vm1009 = vweird.f32 %v1003
    %vm1010 = vweird.f32 %v1004
    %vm1011 = vmor %vm1009, %vm1010
    %v1012 = vsel %vm1011, %v1004, %v1008
    %v1013 = vand.u32 2147483647, %v1003
    %vm1014 = vcmp.eq.f32.partialorder %v1013, 8.507059e+37
    %v1015 = vand.u32 %v1003, 2147483648
    %v1016 = vor.u32 1.1754944e-38, %v1015
    %v1017 = vsel %vm1014, %v1016, %v1012
    %v1018 = vmul.f32 1.0, %v1017
    %v1019 = vtanh.pop %v999
    %v1020 = vmul.f32 %v1018, %v948
    %1022 = vrot.lane.b32.xlu0 %v1019, 64
    %v1023 = vpop.permute.xlu0 %1022
    %v1025 = vmul.f32 %v1018, %v1023
    %1027 = vrot.lane.b32.xlu0 %v1025, 32
    %v1028 = vpop.permute.xlu0 %1027
    %v1030 = vadd.f32 %v1020, %v1028
    %v1031 = vtanh.pop %v1030
    %1033 = vrot.lane.b32.xlu0 %v1031, 64
    %v1034 = vpop.permute.xlu0 %1033
    %v1036 = vmul.f32 %v1018, %v1034
    %1038 = vrot.lane.b32.xlu0 %v1036, 32
    %v1039 = vpop.permute.xlu0 %1038
    %s1041 = scalar_lea.vmem [#allocation4], 6
    %1042 = vst.msk [vmem:[%s1041] sm:$0x3] %vm99, %v1039
    %s1043 = scalar_lea.vmem [#allocation3], 8
    %v1044 = vld [vmem:[%s1043] sm:$0x3]
    %v1045 = vpack.c.bf16 %v1036, %v1036
    %v1046 = vld [vmem:[%s724] sm:$0xf]
    %v1047 = vld [vmem:[%s724 + $0x4] sm:$0xf]
    %v1048 = vld [vmem:[%s724 + $0x8] sm:$0xf]
    %v1049 = vld [vmem:[%s724 + $0xc] sm:$0xf]
    %1051 = vrot.lane.b32.xlu0 %v1045, 32
    %v1052 = vpop.permute.xlu0 %1051
    %v1057 = vunpack.c.l.b16 %v1046
    %v1058 = vunpack.c.l.b16 %v1047
    %v1059 = vunpack.c.l.b16 %v1048
    %v1060 = vunpack.c.l.b16 %v1049
    %v1061 = vpack.c.b16 %v1058, %v1057
    %v1062 = vpack.c.b16 %v1060, %v1059
    %v1066 = vsel %vm40, %v1052, 0
    %1068 = vmatpush.bf16.msra.mxu0 0
    %1069 = vmatpush.bf16.msra.mxu0 0
    %1070 = vmatpush.bf16.msra.mxu0 0
    %1071 = vmatpush.bf16.msra.mxu0 0
    %1072 = vmatpush.bf16.msra.mxu0 0
    %1073 = vmatpush.bf16.msra.mxu0 0
    %1074 = vmatpush.bf16.msra.mxu0 %v1062
    %1075 = vmatpush.bf16.msra.mxu0 %v1061
    %1076 = vmatmul.bf16.gmra.mxu0 %v1066
    %v1077 = vpop.f32.mrf.mxu0
    %v1078 = vadd.f32 0.0, %v1077
    %v1079 = vpop.f32.mrf.mxu0
    %1080 = vdwg.mxu0
    %v1081 = vadd.f32 %v1044, %v1078
    %v1082 = vxor.u32 %v1081, 2147483648
    %v1083 = vmul.f32 %v1082, 1.442695
    %v1084 = vpow.pop %v1083
    %v1085 = vadd.f32 %v1084, 1.0
    %v1086 = vrcp.pop %v1085
    %v1087 = vmul.f32 %v1085, %v1086
    %v1088 = vsub.f32 1.0, %v1087
    %v1089 = vmul.f32 %v1086, %v1088
    %v1090 = vadd.f32 %v1086, %v1089
    %vm1091 = vweird.f32 %v1085
    %vm1092 = vweird.f32 %v1086
    %vm1093 = vmor %vm1091, %vm1092
    %v1094 = vsel %vm1093, %v1086, %v1090
    %v1095 = vand.u32 2147483647, %v1085
    %vm1096 = vcmp.eq.f32.partialorder %v1095, 8.507059e+37
    %v1097 = vand.u32 %v1085, 2147483648
    %v1098 = vor.u32 1.1754944e-38, %v1097
    %v1099 = vsel %vm1096, %v1098, %v1094
    %v1100 = vmul.f32 1.0, %v1099
    %v1101 = vtanh.pop %v1081
    %v1102 = vmul.f32 %v1100, %v1030
    %1104 = vrot.lane.b32.xlu0 %v1101, 64
    %v1105 = vpop.permute.xlu0 %1104
    %v1107 = vmul.f32 %v1100, %v1105
    %1109 = vrot.lane.b32.xlu0 %v1107, 32
    %v1110 = vpop.permute.xlu0 %1109
    %v1112 = vadd.f32 %v1102, %v1110
    %v1113 = vtanh.pop %v1112
    %1115 = vrot.lane.b32.xlu0 %v1113, 64
    %v1116 = vpop.permute.xlu0 %1115
    %v1118 = vmul.f32 %v1100, %v1116
    %1120 = vrot.lane.b32.xlu0 %v1118, 32
    %v1121 = vpop.permute.xlu0 %1120
    %s1123 = scalar_lea.vmem [#allocation4], 8
    %1124 = vst.msk [vmem:[%s1123] sm:$0x3] %vm99, %v1121
    %s1125 = scalar_lea.vmem [#allocation3], 10
    %v1126 = vld [vmem:[%s1125] sm:$0x3]
    %v1127 = vpack.c.bf16 %v1118, %v1118
    %v1128 = vld [vmem:[%s724] sm:$0xf]
    %v1129 = vld [vmem:[%s724 + $0x4] sm:$0xf]
    %v1130 = vld [vmem:[%s724 + $0x8] sm:$0xf]
    %v1131 = vld [vmem:[%s724 + $0xc] sm:$0xf]
    %1133 = vrot.lane.b32.xlu0 %v1127, 32
    %v1134 = vpop.permute.xlu0 %1133
    %v1139 = vunpack.c.l.b16 %v1128
    %v1140 = vunpack.c.l.b16 %v1129
    %v1141 = vunpack.c.l.b16 %v1130
    %v1142 = vunpack.c.l.b16 %v1131
    %v1143 = vpack.c.b16 %v1140, %v1139
    %v1144 = vpack.c.b16 %v1142, %v1141
    %v1148 = vsel %vm40, %v1134, 0
    %1150 = vmatpush.bf16.msra.mxu0 0
    %1151 = vmatpush.bf16.msra.mxu0 0
    %1152 = vmatpush.bf16.msra.mxu0 0
    %1153 = vmatpush.bf16.msra.mxu0 0
    %1154 = vmatpush.bf16.msra.mxu0 0
    %1155 = vmatpush.bf16.msra.mxu0 0
    %1156 = vmatpush.bf16.msra.mxu0 %v1144
    %1157 = vmatpush.bf16.msra.mxu0 %v1143
    %1158 = vmatmul.bf16.gmra.mxu0 %v1148
    %v1159 = vpop.f32.mrf.mxu0
    %v1160 = vadd.f32 0.0, %v1159
    %v1161 = vpop.f32.mrf.mxu0
    %1162 = vdwg.mxu0
    %v1163 = vadd.f32 %v1126, %v1160
    %v1164 = vxor.u32 %v1163, 2147483648
    %v1165 = vmul.f32 %v1164, 1.442695
    %v1166 = vpow.pop %v1165
    %v1167 = vadd.f32 %v1166, 1.0
    %v1168 = vrcp.pop %v1167
    %v1169 = vmul.f32 %v1167, %v1168
    %v1170 = vsub.f32 1.0, %v1169
    %v1171 = vmul.f32 %v1168, %v1170
    %v1172 = vadd.f32 %v1168, %v1171
    %vm1173 = vweird.f32 %v1167
    %vm1174 = vweird.f32 %v1168
    %vm1175 = vmor %vm1173, %vm1174
    %v1176 = vsel %vm1175, %v1168, %v1172
    %v1177 = vand.u32 2147483647, %v1167
    %vm1178 = vcmp.eq.f32.partialorder %v1177, 8.507059e+37
    %v1179 = vand.u32 %v1167, 2147483648
    %v1180 = vor.u32 1.1754944e-38, %v1179
    %v1181 = vsel %vm1178, %v1180, %v1176
    %v1182 = vmul.f32 1.0, %v1181
    %v1183 = vtanh.pop %v1163
    %v1184 = vmul.f32 %v1182, %v1112
    %1186 = vrot.lane.b32.xlu0 %v1183, 64
    %v1187 = vpop.permute.xlu0 %1186
    %v1189 = vmul.f32 %v1182, %v1187
    %1191 = vrot.lane.b32.xlu0 %v1189, 32
    %v1192 = vpop.permute.xlu0 %1191
    %v1194 = vadd.f32 %v1184, %v1192
    %v1195 = vtanh.pop %v1194
    %1197 = vrot.lane.b32.xlu0 %v1195, 64
    %v1198 = vpop.permute.xlu0 %1197
    %v1200 = vmul.f32 %v1182, %v1198
    %1202 = vrot.lane.b32.xlu0 %v1200, 32
    %v1203 = vpop.permute.xlu0 %1202
    %s1205 = scalar_lea.vmem [#allocation4], 10
    %1206 = vst.msk [vmem:[%s1205] sm:$0x3] %vm99, %v1203
    %s1207 = scalar_lea.vmem [#allocation3], 12
    %v1208 = vld [vmem:[%s1207] sm:$0x3]
    %v1209 = vpack.c.bf16 %v1200, %v1200
    %v1210 = vld [vmem:[%s724] sm:$0xf]
    %v1211 = vld [vmem:[%s724 + $0x4] sm:$0xf]
    %v1212 = vld [vmem:[%s724 + $0x8] sm:$0xf]
    %v1213 = vld [vmem:[%s724 + $0xc] sm:$0xf]
    %1215 = vrot.lane.b32.xlu0 %v1209, 32
    %v1216 = vpop.permute.xlu0 %1215
    %v1221 = vunpack.c.l.b16 %v1210
    %v1222 = vunpack.c.l.b16 %v1211
    %v1223 = vunpack.c.l.b16 %v1212
    %v1224 = vunpack.c.l.b16 %v1213
    %v1225 = vpack.c.b16 %v1222, %v1221
    %v1226 = vpack.c.b16 %v1224, %v1223
    %v1230 = vsel %vm40, %v1216, 0
    %1232 = vmatpush.bf16.msra.mxu0 0
    %1233 = vmatpush.bf16.msra.mxu0 0
    %1234 = vmatpush.bf16.msra.mxu0 0
    %1235 = vmatpush.bf16.msra.mxu0 0
    %1236 = vmatpush.bf16.msra.mxu0 0
    %1237 = vmatpush.bf16.msra.mxu0 0
    %1238 = vmatpush.bf16.msra.mxu0 %v1226
    %1239 = vmatpush.bf16.msra.mxu0 %v1225
    %1240 = vmatmul.bf16.gmra.mxu0 %v1230
    %v1241 = vpop.f32.mrf.mxu0
    %v1242 = vadd.f32 0.0, %v1241
    %v1243 = vpop.f32.mrf.mxu0
    %1244 = vdwg.mxu0
    %v1245 = vadd.f32 %v1208, %v1242
    %v1246 = vxor.u32 %v1245, 2147483648
    %v1247 = vmul.f32 %v1246, 1.442695
    %v1248 = vpow.pop %v1247
    %v1249 = vadd.f32 %v1248, 1.0
    %v1250 = vrcp.pop %v1249
    %v1251 = vmul.f32 %v1249, %v1250
    %v1252 = vsub.f32 1.0, %v1251
    %v1253 = vmul.f32 %v1250, %v1252
    %v1254 = vadd.f32 %v1250, %v1253
    %vm1255 = vweird.f32 %v1249
    %vm1256 = vweird.f32 %v1250
    %vm1257 = vmor %vm1255, %vm1256
    %v1258 = vsel %vm1257, %v1250, %v1254
    %v1259 = vand.u32 2147483647, %v1249
    %vm1260 = vcmp.eq.f32.partialorder %v1259, 8.507059e+37
    %v1261 = vand.u32 %v1249, 2147483648
    %v1262 = vor.u32 1.1754944e-38, %v1261
    %v1263 = vsel %vm1260, %v1262, %v1258
    %v1264 = vmul.f32 1.0, %v1263
    %v1265 = vtanh.pop %v1245
    %v1266 = vmul.f32 %v1264, %v1194
    %1268 = vrot.lane.b32.xlu0 %v1265, 64
    %v1269 = vpop.permute.xlu0 %1268
    %v1271 = vmul.f32 %v1264, %v1269
    %1273 = vrot.lane.b32.xlu0 %v1271, 32
    %v1274 = vpop.permute.xlu0 %1273
    %v1276 = vadd.f32 %v1266, %v1274
    %v1277 = vtanh.pop %v1276
    %1279 = vrot.lane.b32.xlu0 %v1277, 64
    %v1280 = vpop.permute.xlu0 %1279
    %v1282 = vmul.f32 %v1264, %v1280
    %1284 = vrot.lane.b32.xlu0 %v1282, 32
    %v1285 = vpop.permute.xlu0 %1284
    %s1287 = scalar_lea.vmem [#allocation4], 12
    %1288 = vst.msk [vmem:[%s1287] sm:$0x3] %vm99, %v1285
    %s1289 = scalar_lea.vmem [#allocation3], 14
    %v1290 = vld [vmem:[%s1289] sm:$0x3]
    %v1291 = vpack.c.bf16 %v1282, %v1282
    %v1292 = vld [vmem:[%s724] sm:$0xf]
    %v1293 = vld [vmem:[%s724 + $0x4] sm:$0xf]
    %v1294 = vld [vmem:[%s724 + $0x8] sm:$0xf]
    %v1295 = vld [vmem:[%s724 + $0xc] sm:$0xf]
    %1297 = vrot.lane.b32.xlu0 %v1291, 32
    %v1298 = vpop.permute.xlu0 %1297
    %v1303 = vunpack.c.l.b16 %v1292
    %v1304 = vunpack.c.l.b16 %v1293
    %v1305 = vunpack.c.l.b16 %v1294
    %v1306 = vunpack.c.l.b16 %v1295
    %v1307 = vpack.c.b16 %v1304, %v1303
    %v1308 = vpack.c.b16 %v1306, %v1305
    %v1312 = vsel %vm40, %v1298, 0
    %1314 = vmatpush.bf16.msra.mxu0 0
    %1315 = vmatpush.bf16.msra.mxu0 0
    %1316 = vmatpush.bf16.msra.mxu0 0
    %1317 = vmatpush.bf16.msra.mxu0 0
    %1318 = vmatpush.bf16.msra.mxu0 0
    %1319 = vmatpush.bf16.msra.mxu0 0
    %1320 = vmatpush.bf16.msra.mxu0 %v1308
    %1321 = vmatpush.bf16.msra.mxu0 %v1307
    %1322 = vmatmul.bf16.gmra.mxu0 %v1312
    %v1323 = vpop.f32.mrf.mxu0
    %v1324 = vadd.f32 0.0, %v1323
    %v1325 = vpop.f32.mrf.mxu0
    %1326 = vdwg.mxu0
    %v1327 = vadd.f32 %v1290, %v1324
    %v1328 = vxor.u32 %v1327, 2147483648
    %v1329 = vmul.f32 %v1328, 1.442695
    %v1330 = vpow.pop %v1329
    %v1331 = vadd.f32 %v1330, 1.0
    %v1332 = vrcp.pop %v1331
    %v1333 = vmul.f32 %v1331, %v1332
    %v1334 = vsub.f32 1.0, %v1333
    %v1335 = vmul.f32 %v1332, %v1334
    %v1336 = vadd.f32 %v1332, %v1335
    %vm1337 = vweird.f32 %v1331
    %vm1338 = vweird.f32 %v1332
    %vm1339 = vmor %vm1337, %vm1338
    %v1340 = vsel %vm1339, %v1332, %v1336
    %v1341 = vand.u32 2147483647, %v1331
    %vm1342 = vcmp.eq.f32.partialorder %v1341, 8.507059e+37
    %v1343 = vand.u32 %v1331, 2147483648
    %v1344 = vor.u32 1.1754944e-38, %v1343
    %v1345 = vsel %vm1342, %v1344, %v1340
    %v1346 = vmul.f32 1.0, %v1345
    %v1347 = vtanh.pop %v1327
    %v1348 = vmul.f32 %v1346, %v1276
    %1350 = vrot.lane.b32.xlu0 %v1347, 64
    %v1351 = vpop.permute.xlu0 %1350
    %v1353 = vmul.f32 %v1346, %v1351
    %1355 = vrot.lane.b32.xlu0 %v1353, 32
    %v1356 = vpop.permute.xlu0 %1355
    %v1358 = vadd.f32 %v1348, %v1356
    %v1359 = vtanh.pop %v1358
    %1361 = vrot.lane.b32.xlu0 %v1359, 64
    %v1362 = vpop.permute.xlu0 %1361
    %v1364 = vmul.f32 %v1346, %v1362
    %1366 = vrot.lane.b32.xlu0 %v1364, 32
    %v1367 = vpop.permute.xlu0 %1366
    %s1369 = scalar_lea.vmem [#allocation4], 14
    %1370 = vst.msk [vmem:[%s1369] sm:$0x3] %vm99, %v1367
    %s1371 = scalar_lea.vmem [#allocation6], 2
    %1372 = vst.msk [vmem:[%s1371] sm:$0x3] %vm99, %v1367
    %1374 = vrot.lane.b32.xlu0 %v1358, 96
    %v1375 = vpop.permute.xlu0 %1374
    %s1377 = scalar_lea.vmem [#allocation8], 2
    %1378 = vst.msk [vmem:[%s1377] sm:$0x3] %vm99, %v1375
    // Predicated region
    $region18: #{lstm_unit_forward.1} parent=1 // pred_check
      _
    $region19: #{lstm_unit_forward.1} parent=1 // pred_check_branch
      %1380 = sbr.rel (0) target = $region21
    $region20: #{lstm_unit_forward.1} parent=1 // pred_region
      %1382 = vsyncadd [#allocation5], 0
      %s1383 = sshll.u32 [#allocation4], 4
      %s1384 = int_to_ptr.vmem [resolvable:$true] %s1383
      %s1385 = sshll.u32 %s4, 4
      %s1386 = int_to_ptr.hbm [resolvable:$true] %s1385
      %1391 = dma.vmem_to_hbm [thread:$0]  %s1384, 256, %s1386, [#allocation5], 32, 32, 2
    $region21: #{lstm_unit_forward.1} parent=1 // pred_fallthru
      _
    // Predicated region
    $region22: #{lstm_unit_forward.1} parent=1 // pred_check
      _
    $region23: #{lstm_unit_forward.1} parent=1 // pred_check_branch
      %1393 = sbr.rel (0) target = $region25
    $region24: #{lstm_unit_forward.1} parent=1 // pred_region
      %1395 = vsyncadd [#allocation7], 0
      %s1396 = sshll.u32 [#allocation6], 4
      %s1397 = int_to_ptr.vmem [resolvable:$true] %s1396
      %s1398 = sshll.u32 %s5, 4
      %s1399 = int_to_ptr.hbm [resolvable:$true] %s1398
      %1404 = dma.vmem_to_hbm [thread:$0]  %s1397, 64, %s1399, [#allocation7], 32, 32, 2
    $region25: #{lstm_unit_forward.1} parent=1 // pred_fallthru
      _
    // Predicated region
    $region26: #{lstm_unit_forward.1} parent=1 // pred_check
      _
    $region27: #{lstm_unit_forward.1} parent=1 // pred_check_branch
      %1406 = sbr.rel (0) target = $region29
    $region28: #{lstm_unit_forward.1} parent=1 // pred_region
      %1408 = vsyncadd [#allocation7], 0
      %s1409 = sshll.u32 [#allocation8], 4
      %s1410 = int_to_ptr.vmem [resolvable:$true] %s1409
      %s1411 = sshll.u32 %s6, 4
      %s1412 = int_to_ptr.hbm [resolvable:$true] %s1411
      %1417 = dma.vmem_to_hbm [thread:$0]  %s1410, 64, %s1412, [#allocation7], 32, 32, 2
    $region29: #{lstm_unit_forward.1} parent=1 // pred_fallthru
      _
    // Predicated region
    $region30: #{lstm_unit_forward.1} parent=1 // pred_check
      _
    $region31: #{lstm_unit_forward.1} parent=1 // pred_check_branch
      %1419 = sbr.rel (0) target = $region33
    $region32: #{lstm_unit_forward.1} parent=1 // pred_region
      %1421 = dma.done [#allocation5], 256
    $region33: #{lstm_unit_forward.1} parent=1 // pred_fallthru
      _
    // Predicated region
    $region34: #{lstm_unit_forward.1} parent=1 // pred_check
      _
    $region35: #{lstm_unit_forward.1} parent=1 // pred_check_branch
      %1423 = sbr.rel (0) target = $region37
    $region36: #{lstm_unit_forward.1} parent=1 // pred_region
      %1425 = dma.done [#allocation7], 64
    $region37: #{lstm_unit_forward.1} parent=1 // pred_fallthru
      _
    // Predicated region
    $region38: #{lstm_unit_forward.1} parent=1 // pred_check
      _
    $region39: #{lstm_unit_forward.1} parent=1 // pred_check_branch
      %1427 = sbr.rel (0) target = $region41
    $region40: #{lstm_unit_forward.1} parent=1 // pred_region
      %1429 = dma.done [#allocation7], 64
    $region41: #{lstm_unit_forward.1} parent=1 // pred_fallthru
      _
    %1430 = vsyncpa [#allocation5], 1
    %1431 = vsyncpa [#allocation7], 1

</llo_original>
